<compile_context>
chip_gen: v7x
topology: tpu7x:2x2x1
jax: 0.10.0
libtpu: 0.0.40
codegen_flags: <defaults>
</compile_context>

<pallas_src>
import functools
import math

import jax
import jax.numpy as jnp
from jax.experimental import pallas as pl
from jax.experimental.pallas import tpu as pltpu


def _default_vmem_limit():
    # 3/4 of physical VMEM, capped at 96 MiB; fallback 48 MiB (fits v7x 64 MiB).
    try:
        phys = int(pltpu.get_tpu_info().vmem_capacity_bytes)
    except Exception:
        phys = 64 * 1024 * 1024
    return int(min(phys * 3 // 4, 96 * 1024 * 1024))


VMEM_LIMIT = _default_vmem_limit()


def _pick_tile(dim, desired, quanta=(256, 128)):
    """Largest multiple of a preferred quantum <= desired that divides dim.
    Quanta tried in order (256 keeps the 2x256x256 MXU full on v6e/v7x, 128 is
    the lane width / v5e MXU edge).  Falls back to the full dim (always legal)."""
    if dim <= desired:
        return dim
    for q in quanta:
        t = (min(desired, dim) // q) * q
        while t >= q:
            if dim % t == 0:
                return t
            t -= q
    return dim


def _weight_spec(block_shape, index_map, multibuffer):
    # Triple-buffer the weight stream when the reduction axis is split: hides
    # the exposed weight DMA behind short matmuls (small-M dense, classifier).
    if multibuffer:
        try:
            return pl.BlockSpec(block_shape, index_map, pipeline_mode=pl.Buffered(3))
        except Exception:
            pass
    return pl.BlockSpec(block_shape, index_map)


# ----------------------------- Pallas kernels --------------------------------

def _dense_kernel(x_ref, w_ref, b_ref, o_ref, acc_ref, *, activation):
    # grid = (M//tm, N//tn, K//tk); K is the innermost (reduction) axis.
    @pl.when(pl.program_id(2) == 0)
    def _():
        acc_ref[...] = jnp.zeros_like(acc_ref)

    # bf16 MXU operands, f32 accumulation (astype is a no-op for bf16 inputs).
    acc_ref[...] += jnp.dot(x_ref[...].astype(jnp.bfloat16),
                            w_ref[...].astype(jnp.bfloat16),
                            preferred_element_type=jnp.float32)

    @pl.when(pl.program_id(2) == pl.num_programs(2) - 1)
    def _():
        y = acc_ref[...] + b_ref[...]
        if activation == "gelu":
            # exact erf GELU in f32 (matches HF BERT default).
            y = 0.5 * y * (1.0 + jax.lax.erf(y * (1.0 / math.sqrt(2.0))))
        o_ref[...] = y.astype(o_ref.dtype)


def _ffn_kernel(x_ref, w1_ref, b1_ref, w2_ref, b2_ref, o_ref, acc_ref):
    # grid = (M//tm, F//tf); F (the 4H intermediate width) is the reduction of
    # the second matmul, so the (tm, tf) GELU intermediate never touches HBM.
    @pl.when(pl.program_id(1) == 0)
    def _():
        acc_ref[...] = jnp.zeros_like(acc_ref)

    h = jnp.dot(x_ref[...].astype(jnp.bfloat16), w1_ref[...].astype(jnp.bfloat16),
                preferred_element_type=jnp.float32) + b1_ref[...]
    h = 0.5 * h * (1.0 + jax.lax.erf(h * (1.0 / math.sqrt(2.0))))   # exact erf GELU
    acc_ref[...] += jnp.dot(h.astype(jnp.bfloat16), w2_ref[...].astype(jnp.bfloat16),
                            preferred_element_type=jnp.float32)

    @pl.when(pl.program_id(1) == pl.num_programs(1) - 1)
    def _():
        o_ref[...] = (acc_ref[...] + b2_ref[...]).astype(o_ref.dtype)


def _layernorm_kernel(x_ref, g_ref, b_ref, o_ref):
    x = x_ref[...].astype(jnp.float32)
    mean = jnp.mean(x, axis=-1, keepdims=True)
    var = jnp.mean(jnp.square(x - mean), axis=-1, keepdims=True)
    inv = jax.lax.rsqrt(var + 1e-12)
    o_ref[...] = ((x - mean) * inv * g_ref[...] + b_ref[...]).astype(o_ref.dtype)


def _add_layernorm_kernel(a_ref, r_ref, g_ref, b_ref, o_ref):
    # Residual add fused with layernorm (saves two full-activation HBM passes).
    x = a_ref[...].astype(jnp.float32) + r_ref[...].astype(jnp.float32)
    mean = jnp.mean(x, axis=-1, keepdims=True)
    var = jnp.mean(jnp.square(x - mean), axis=-1, keepdims=True)
    inv = jax.lax.rsqrt(var + 1e-12)
    o_ref[...] = ((x - mean) * inv * g_ref[...] + b_ref[...]).astype(o_ref.dtype)


def _attention_kernel(n_heads, head_dim, qkv_ref, mask_ref, o_ref):
    # One batch element per grid step; all heads handled here so the output
    # store is a single lane-dense (S, H) block and no head transpose/split is
    # ever materialized in HBM.  Q is pre-scaled (1/sqrt(hd) folded into the
    # QKV weights at init time).
    # TODO(synk): for long S (>= ~1024) switch to a KV-tiled online-softmax
    #             (flash-style) loop so the (S, S) score tile never
    #             materializes (VMEM risk on v7x's 64 MiB).
    H = n_heads * head_dim
    m = mask_ref[...]                                        # (1, S) additive, f32
    ctxs = []
    for h in range(n_heads):
        q = qkv_ref[:, h * head_dim:(h + 1) * head_dim]                  # (S, hd) bf16
        k = qkv_ref[:, H + h * head_dim:H + (h + 1) * head_dim]          # (S, hd) bf16
        v = qkv_ref[:, 2 * H + h * head_dim:2 * H + (h + 1) * head_dim]  # (S, hd) bf16
        s = jax.lax.dot_general(q, k, (((1,), (1,)), ((), ())),
                                preferred_element_type=jnp.float32)      # (S, S) f32
        s = s + m
        s = s - jnp.max(s, axis=-1, keepdims=True)
        p = jnp.exp(s)
        p = p * pl.reciprocal(jnp.sum(p, axis=-1, keepdims=True), approx=True)
        ctxs.append(jnp.dot(p.astype(jnp.bfloat16), v,
                            preferred_element_type=jnp.float32))          # (S, hd) f32
    o_ref[...] = jnp.concatenate(ctxs, axis=-1).astype(o_ref.dtype)       # (S, H)


# ----------------------------- kernel wrappers --------------------------------

def dense(x, w, b, activation=None, out_dtype=jnp.bfloat16, tm=256, tn=512, tk=512):
    """Tiled (M,K)@(K,N)+(N,) with bf16 MXU operands and f32 accumulation."""
    M, K = x.shape
    K2, N = w.shape
    assert K == K2
    tm = _pick_tile(M, tm, (8,))
    tn = _pick_tile(N, tn)
    tk = _pick_tile(K, tk)
    grid = (M // tm, N // tn, K // tk)

    kern = functools.partial(_dense_kernel, activation=activation)
    flops = 2 * M * N * K
    bytes_accessed = (M * K * x.dtype.itemsize + K * N * w.dtype.itemsize
                      + M * N * jnp.dtype(out_dtype).itemsize + N * 4)
    return pl.pallas_call(
        kern,
        out_shape=jax.ShapeDtypeStruct((M, N), out_dtype),
        grid=grid,
        in_specs=[pl.BlockSpec((tm, tk), lambda i, j, k: (i, k)),
                  _weight_spec((tk, tn), lambda i, j, k: (k, j), grid[2] > 1),
                  pl.BlockSpec((1, tn), lambda i, j, k: (0, j))],
        out_specs=pl.BlockSpec((tm, tn), lambda i, j, k: (i, j)),
        scratch_shapes=[pltpu.VMEM((tm, tn), jnp.float32)],
        compiler_params=pltpu.CompilerParams(
            dimension_semantics=("parallel", "parallel", "arbitrary"),
            vmem_limit_bytes=VMEM_LIMIT),
        cost_estimate=pl.CostEstimate(
            flops=flops,
            transcendentals=(M * N if activation == "gelu" else 0),
            bytes_accessed=bytes_accessed),
    )(x, w, b.reshape(1, N))


def ffn(x, w1, b1, w2, b2, tm=256, tf=512):
    """Fused feed-forward: gelu(x@w1+b1)@w2+b2; the (M, ffn) intermediate
    lives only in VMEM / vregs and never round-trips HBM."""
    M, H = x.shape
    H2, F = w1.shape
    assert H == H2 and w2.shape == (F, H)
    tm = _pick_tile(M, tm, (8,))
    tf = _pick_tile(F, tf)
    grid = (M // tm, F // tf)
    flops = 4 * M * F * H
    bytes_accessed = (M * H * x.dtype.itemsize + H * F * w1.dtype.itemsize
                      + F * H * w2.dtype.itemsize + M * H * 2 + (F + H) * 4)
    return pl.pallas_call(
        _ffn_kernel,
        out_shape=jax.ShapeDtypeStruct((M, H), jnp.bfloat16),
        grid=grid,
        in_specs=[pl.BlockSpec((tm, H), lambda i, j: (i, 0)),
                  pl.BlockSpec((H, tf), lambda i, j: (0, j)),
                  pl.BlockSpec((1, tf), lambda i, j: (0, j)),
                  _weight_spec((tf, H), lambda i, j: (j, 0), grid[1] > 1),
                  pl.BlockSpec((1, H), lambda i, j: (0, 0))],
        out_specs=pl.BlockSpec((tm, H), lambda i, j: (i, 0)),
        scratch_shapes=[pltpu.VMEM((tm, H), jnp.float32)],
        compiler_params=pltpu.CompilerParams(
            dimension_semantics=("parallel", "arbitrary"),
            vmem_limit_bytes=VMEM_LIMIT),
        cost_estimate=pl.CostEstimate(
            flops=flops, transcendentals=M * F, bytes_accessed=bytes_accessed),
    )(x, w1, b1.reshape(1, F), w2, b2.reshape(1, H))


def layernorm(x, g, b, residual=None, tm=512):
    """Row-tiled layernorm (bf16 out, f32 stats); optionally fuses x+residual."""
    M, H = x.shape
    tm = _pick_tile(M, tm, (8,))
    grid = (M // tm,)
    row = pl.BlockSpec((tm, H), lambda i: (i, 0))
    par = pl.BlockSpec((1, H), lambda i: (0, 0))
    if residual is None:
        kern = _layernorm_kernel
        args = (x, g.reshape(1, H), b.reshape(1, H))
        in_specs = [row, par, par]
    else:
        kern = _add_layernorm_kernel
        args = (x, residual, g.reshape(1, H), b.reshape(1, H))
        in_specs = [row, row, par, par]
    return pl.pallas_call(
        kern,
        out_shape=jax.ShapeDtypeStruct((M, H), jnp.bfloat16),
        grid=grid,
        in_specs=in_specs,
        out_specs=row,
        compiler_params=pltpu.CompilerParams(
            dimension_semantics=("parallel",),
            vmem_limit_bytes=VMEM_LIMIT),
    )(*args)


def attention(qkv, add_mask, n_heads):
    """qkv: (B, S, 3H) bf16 fused projection; add_mask: (B, 1, S) additive f32.
    Returns (B, S, H) bf16 context; head order matches the QKV weight layout,
    so reshaping back to (B*S, H) afterwards is free."""
    B, S, threeH = qkv.shape
    H = threeH // 3
    hd = H // n_heads
    kern = functools.partial(_attention_kernel, n_heads, hd)
    return pl.pallas_call(
        kern,
        out_shape=jax.ShapeDtypeStruct((B, S, H), jnp.bfloat16),
        grid=(B,),
        in_specs=[pl.BlockSpec((None, S, threeH), lambda b: (b, 0, 0)),
                  pl.BlockSpec((None, 1, S), lambda b: (b, 0, 0))],
        out_specs=pl.BlockSpec((None, S, H), lambda b: (b, 0, 0)),
        compiler_params=pltpu.CompilerParams(
            dimension_semantics=("parallel",),
            vmem_limit_bytes=VMEM_LIMIT),
        cost_estimate=pl.CostEstimate(
            flops=B * n_heads * 4 * S * S * hd,
            transcendentals=B * n_heads * S * S,
            bytes_accessed=B * S * (3 * H + H) * 2 + B * S * 4),
    )(qkv, add_mask)


# ----------------------------- model definition -------------------------------

def init_params(key, vocab, max_pos, H, ffn_dim, n_layers, n_classes, n_heads):
    def nrm(k, shape, scale=1.0, dtype=jnp.bfloat16):
        return (jax.random.normal(k, shape, jnp.float32) * (0.02 * scale)).astype(dtype)

    keys = iter(jax.random.split(key, 8 + n_layers * 8))
    hd = H // n_heads
    q_scale = 1.0 / math.sqrt(hd)   # folded into Q columns of the QKV weight

    # classifier weight padded to a lane-dense (multiple-of-128) output width.
    pad_n = max(128, ((n_classes + 127) // 128) * 128)
    cls_w = jax.random.normal(next(keys), (H, n_classes), jnp.float32) * 0.02
    cls_w = jnp.pad(cls_w, ((0, 0), (0, pad_n - n_classes))).astype(jnp.bfloat16)

    params = {
        'word_emb': nrm(next(keys), (vocab, H), dtype=jnp.float32),
        'pos_emb': nrm(next(keys), (max_pos, H), dtype=jnp.float32),
        'type_emb': nrm(next(keys), (2, H), dtype=jnp.float32),
        'emb_ln_g': jnp.ones((H,), jnp.float32),
        'emb_ln_b': jnp.zeros((H,), jnp.float32),
        'cls_w': cls_w,
        'cls_b': jnp.zeros((pad_n,), jnp.float32),
        'layers': [],
    }
    for _ in range(n_layers):
        wq = nrm(next(keys), (H, H), scale=q_scale)   # pre-scaled Q projection
        wk = nrm(next(keys), (H, H))
        wv = nrm(next(keys), (H, H))
        params['layers'].append({
            # fused QKV projection: one (H, 3H) matmul per layer.
            'w_qkv': jnp.concatenate([wq, wk, wv], axis=1),
            'b_qkv': jnp.zeros((3 * H,), jnp.float32),
            'wo': nrm(next(keys), (H, H)), 'bo': jnp.zeros((H,), jnp.float32),
            'ln1_g': jnp.ones((H,), jnp.float32),
            'ln1_b': jnp.zeros((H,), jnp.float32),
            'w1': nrm(next(keys), (H, ffn_dim)), 'b1': jnp.zeros((ffn_dim,), jnp.float32),
            'w2': nrm(next(keys), (ffn_dim, H)), 'b2': jnp.zeros((H,), jnp.float32),
            'ln2_g': jnp.ones((H,), jnp.float32),
            'ln2_b': jnp.zeros((H,), jnp.float32),
        })
    return params


def bert_forward(params, input_ids, attention_masks, n_heads, n_classes):
    B, S = input_ids.shape
    H = params['word_emb'].shape[1]

    # --- embeddings (plain-JAX gathers) ---
    # TODO(synk): only segment-0 token_type embeddings are added (single-segment inputs).
    pos_ids = jnp.arange(S, dtype=jnp.int32)
    x = (params['word_emb'][input_ids]
         + params['pos_emb'][pos_ids][None, :, :]
         + params['type_emb'][0][None, None, :])                   # (B, S, H) f32
    x = layernorm(x.reshape(B * S, H),
                  params['emb_ln_g'], params['emb_ln_b'])           # (B*S, H) bf16

    # additive attention mask: 0 where attended, -1e9 where masked   (B, 1, S)
    add_mask = ((1.0 - attention_masks.astype(jnp.float32)) * -1e9)[:, None, :]

    for lp in params['layers']:
        h = x                                                       # (B*S, H) bf16
        qkv = dense(h, lp['w_qkv'], lp['b_qkv'])                    # (B*S, 3H) bf16
        # contiguity-preserving reshape (free); heads sliced inside the kernel.
        ctx = attention(qkv.reshape(B, S, 3 * H), add_mask, n_heads)   # (B, S, H)
        attn_out = dense(ctx.reshape(B * S, H), lp['wo'], lp['bo'])
        x1 = layernorm(attn_out, lp['ln1_g'], lp['ln1_b'], residual=h)

        ff = ffn(x1, lp['w1'], lp['b1'], lp['w2'], lp['b2'])        # fused FFN
        x = layernorm(ff, lp['ln2_g'], lp['ln2_b'], residual=x1)

    # --- CLS token + classifier head (matches BERT.forward in the module) ---
    cls_tokens = x.reshape(B, S, H)[:, 0, :]                            # (B, H)
    logits = dense(cls_tokens, params['cls_w'], params['cls_b'],
                   out_dtype=jnp.float32)                               # (B, 128) lane-dense
    return logits[:, :n_classes]                                        # (B, class_num)


# ----------------------------------- main -------------------------------------

if __name__ == "__main__":
    # Small correctness smoke test; real perf tuning should use BERT-base dims
    # (H=768, S=128-512, B>=8).
    B, S = 2, 8
    H, N_HEADS, FFN, N_LAYERS = 32, 4, 64, 2
    VOCAB, MAX_POS, CLASS_NUM = 50, 16, 3

    root = jax.random.PRNGKey(0)
    k_param, k_tok = jax.random.split(root)

    params = init_params(k_param, VOCAB, MAX_POS, H, FFN, N_LAYERS,
                         CLASS_NUM, N_HEADS)

    input_ids = jax.random.randint(k_tok, (B, S), 0, VOCAB, dtype=jnp.int32)
    attention_masks = jnp.ones((B, S), jnp.float32).at[1, 6:].set(0.0)

    fwd = jax.jit(functools.partial(bert_forward,
                                    n_heads=N_HEADS, n_classes=CLASS_NUM))
    logits = fwd(params, input_ids, attention_masks)
    jax.block_until_ready(logits)

    assert logits.shape == (B, CLASS_NUM)
    assert bool(jnp.all(jnp.isfinite(logits)))
    print("KERNEL_OK")
</pallas_src>

<mosaic_0001>
module attributes {stable_mosaic.version = 11 : i64} {
  func.func @_dense_kernel(%arg0: i32, %arg1: i32, %arg2: i32, %arg3: memref<16x32xbf16, #tpu.memory_space<vmem>>, %arg4: memref<32x96xbf16, #tpu.memory_space<vmem>>, %arg5: memref<1x96xf32, #tpu.memory_space<vmem>>, %arg6: memref<16x96xbf16, #tpu.memory_space<vmem>>, %arg7: memref<16x96xf32, #tpu.memory_space<vmem>>) attributes {dimension_semantics = [#tpu.dimension_semantics<parallel>, #tpu.dimension_semantics<parallel>, #tpu.dimension_semantics<arbitrary>], iteration_bounds = array<i64: 1, 1, 1>, scalar_prefetch = 0 : i64, scratch_operands = 1 : i64, tpu.core_type = #tpu.core_type<tc>, window_params = [{transform_indices = @transform_0, window_bounds = array<i64: 16, 32>}, {transform_indices = @transform_1, window_bounds = array<i64: 32, 96>}, {transform_indices = @transform_2, window_bounds = array<i64: 1, 96>}, {transform_indices = @transform_3, window_bounds = array<i64: 16, 96>}]} {
    %c0_i32 = arith.constant 0 : i32
    %0 = arith.cmpi eq, %arg2, %c0_i32 : i32
    %1 = arith.extui %0 : i1 to i32
    %c0_i32_0 = arith.constant 0 : i32
    %2 = arith.cmpi ne, %1, %c0_i32_0 : i32
    scf.if %2 {
      %cst_10 = arith.constant 0.000000e+00 : f32
      %12 = vector.broadcast %cst_10 : f32 to vector<16x96xf32>
      %c0_11 = arith.constant 0 : index
      %c0_12 = arith.constant 0 : index
      %13 = vector.load %arg7[%c0_11, %c0_12] : memref<16x96xf32, #tpu.memory_space<vmem>>, vector<16x96xf32>
      tpu.vector_store %arg7[%c0_11, %c0_12], %12 {strides = array<i32>} : memref<16x96xf32, #tpu.memory_space<vmem>>, vector<16x96xf32>,
    } else {
    }
    %c0 = arith.constant 0 : index
    %c0_1 = arith.constant 0 : index
    %3 = vector.load %arg7[%c0, %c0_1] : memref<16x96xf32, #tpu.memory_space<vmem>>, vector<16x96xf32>
    %c0_2 = arith.constant 0 : index
    %c0_3 = arith.constant 0 : index
    %4 = vector.load %arg3[%c0_2, %c0_3] : memref<16x32xbf16, #tpu.memory_space<vmem>>, vector<16x32xbf16>
    %c0_4 = arith.constant 0 : index
    %c0_5 = arith.constant 0 : index
    %5 = vector.load %arg4[%c0_4, %c0_5] : memref<32x96xbf16, #tpu.memory_space<vmem>>, vector<32x96xbf16>
    %cst = arith.constant dense<0.000000e+00> : vector<16x96xf32>
    %6 = tpu.matmul %4, %5, %cst {dimension_numbers = #tpu.dot_dimension_numbers<[1], [0], [0], [1], [0, 0, 1, 1], [], []>} : vector<16x32xbf16>, vector<32x96xbf16>, vector<16x96xf32> -> vector<16x96xf32>
    %7 = arith.addf %3, %6 : vector<16x96xf32>
    %c0_6 = arith.constant 0 : index
    %c0_7 = arith.constant 0 : index
    %8 = vector.load %arg7[%c0_6, %c0_7] : memref<16x96xf32, #tpu.memory_space<vmem>>, vector<16x96xf32>
    tpu.vector_store %arg7[%c0_6, %c0_7], %7 {strides = array<i32>} : memref<16x96xf32, #tpu.memory_space<vmem>>, vector<16x96xf32>,
    %c0_i32_8 = arith.constant 0 : i32
    %9 = arith.cmpi eq, %arg2, %c0_i32_8 : i32
    %10 = arith.extui %9 : i1 to i32
    %c0_i32_9 = arith.constant 0 : i32
    %11 = arith.cmpi ne, %10, %c0_i32_9 : i32
    scf.if %11 {
      %c0_10 = arith.constant 0 : index
      %c0_11 = arith.constant 0 : index
      %12 = vector.load %arg7[%c0_10, %c0_11] : memref<16x96xf32, #tpu.memory_space<vmem>>, vector<16x96xf32>
      %c0_12 = arith.constant 0 : index
      %c0_13 = arith.constant 0 : index
      %13 = vector.load %arg5[%c0_12, %c0_13] : memref<1x96xf32, #tpu.memory_space<vmem>>, vector<1x96xf32>
      %14 = vector.broadcast %13 : vector<1x96xf32> to vector<16x96xf32>
      %15 = arith.addf %12, %14 : vector<16x96xf32>
      %16 = arith.truncf %15 : vector<16x96xf32> to vector<16x96xbf16>
      %c0_14 = arith.constant 0 : index
      %c0_15 = arith.constant 0 : index
      %17 = vector.load %arg6[%c0_14, %c0_15] : memref<16x96xbf16, #tpu.memory_space<vmem>>, vector<16x96xbf16>
      tpu.vector_store %arg6[%c0_14, %c0_15], %16 {strides = array<i32>} : memref<16x96xbf16, #tpu.memory_space<vmem>>, vector<16x96xbf16>,
    } else {
    }
    return
  }
  func.func @transform_0(%arg0: i32, %arg1: i32, %arg2: i32) -> (i32, i32) {
    %c0_i32 = arith.constant 0 : i32
    return %arg0, %arg2 : i32, i32
  }
  func.func @transform_1(%arg0: i32, %arg1: i32, %arg2: i32) -> (i32, i32) {
    %c0_i32 = arith.constant 0 : i32
    return %arg2, %arg1 : i32, i32
  }
  func.func @transform_2(%arg0: i32, %arg1: i32, %arg2: i32) -> (i32, i32) {
    %c0_i32 = arith.constant 0 : i32
    %c0_i32_0 = arith.constant 0 : i32
    return %c0_i32, %arg1 : i32, i32
  }
  func.func @transform_3(%arg0: i32, %arg1: i32, %arg2: i32) -> (i32, i32) {
    %c0_i32 = arith.constant 0 : i32
    return %arg0, %arg1 : i32, i32
  }
}

module attributes {stable_mosaic.version = 11 : i64} {
  func.func @_layernorm_kernel(%arg0: i32, %arg1: memref<16x32xf32, #tpu.memory_space<vmem>>, %arg2: memref<1x32xf32, #tpu.memory_space<vmem>>, %arg3: memref<1x32xf32, #tpu.memory_space<vmem>>, %arg4: memref<16x32xbf16, #tpu.memory_space<vmem>>) attributes {dimension_semantics = [#tpu.dimension_semantics<parallel>], iteration_bounds = array<i64: 1>, scalar_prefetch = 0 : i64, scratch_operands = 0 : i64, tpu.core_type = #tpu.core_type<tc>, window_params = [{transform_indices = @transform_0, window_bounds = array<i64: 16, 32>}, {pipeline_mode = #tpu.pipeline_mode<synchronous>, transform_indices = @transform_1, window_bounds = array<i64: 1, 32>}, {pipeline_mode = #tpu.pipeline_mode<synchronous>, transform_indices = @transform_2, window_bounds = array<i64: 1, 32>}, {transform_indices = @transform_3, window_bounds = array<i64: 16, 32>}]} {
    %c0 = arith.constant 0 : index
    %c0_0 = arith.constant 0 : index
    %0 = vector.load %arg1[%c0, %c0_0] : memref<16x32xf32, #tpu.memory_space<vmem>>, vector<16x32xf32>
    %cst = arith.constant dense<0.000000e+00> : vector<16xf32>
    %1 = vector.multi_reduction <add>, %0, %cst [1] : vector<16x32xf32> to vector<16xf32>
    %2 = vector.shape_cast %1 : vector<16xf32> to vector<16x1xf32>
    %cst_1 = arith.constant 3.200000e+01 : f32
    %3 = vector.broadcast %cst_1 : f32 to vector<16x1xf32>
    %4 = arith.divf %2, %3 : vector<16x1xf32>
    %5 = vector.broadcast %4 : vector<16x1xf32> to vector<16x32xf32>
    %6 = arith.subf %0, %5 : vector<16x32xf32>
    %7 = arith.mulf %6, %6 : vector<16x32xf32>
    %cst_2 = arith.constant dense<0.000000e+00> : vector<16xf32>
    %8 = vector.multi_reduction <add>, %7, %cst_2 [1] : vector<16x32xf32> to vector<16xf32>
    %9 = vector.shape_cast %8 : vector<16xf32> to vector<16x1xf32>
    %cst_3 = arith.constant 3.200000e+01 : f32
    %10 = vector.broadcast %cst_3 : f32 to vector<16x1xf32>
    %11 = arith.divf %9, %10 : vector<16x1xf32>
    %cst_4 = arith.constant 9.99999996E-13 : f32
    %12 = vector.broadcast %cst_4 : f32 to vector<16x1xf32>
    %13 = arith.addf %11, %12 : vector<16x1xf32>
    %14 = math.rsqrt %13 : vector<16x1xf32>
    %15 = vector.broadcast %4 : vector<16x1xf32> to vector<16x32xf32>
    %16 = arith.subf %0, %15 : vector<16x32xf32>
    %17 = vector.broadcast %14 : vector<16x1xf32> to vector<16x32xf32>
    %18 = arith.mulf %16, %17 : vector<16x32xf32>
    %c0_5 = arith.constant 0 : index
    %c0_6 = arith.constant 0 : index
    %19 = vector.load %arg2[%c0_5, %c0_6] : memref<1x32xf32, #tpu.memory_space<vmem>>, vector<1x32xf32>
    %20 = vector.broadcast %19 : vector<1x32xf32> to vector<16x32xf32>
    %21 = arith.mulf %18, %20 : vector<16x32xf32>
    %c0_7 = arith.constant 0 : index
    %c0_8 = arith.constant 0 : index
    %22 = vector.load %arg3[%c0_7, %c0_8] : memref<1x32xf32, #tpu.memory_space<vmem>>, vector<1x32xf32>
    %23 = vector.broadcast %22 : vector<1x32xf32> to vector<16x32xf32>
    %24 = arith.addf %21, %23 : vector<16x32xf32>
    %25 = arith.truncf %24 : vector<16x32xf32> to vector<16x32xbf16>
    %c0_9 = arith.constant 0 : index
    %c0_10 = arith.constant 0 : index
    %26 = vector.load %arg4[%c0_9, %c0_10] : memref<16x32xbf16, #tpu.memory_space<vmem>>, vector<16x32xbf16>
    tpu.vector_store %arg4[%c0_9, %c0_10], %25 {strides = array<i32>} : memref<16x32xbf16, #tpu.memory_space<vmem>>, vector<16x32xbf16>,
    return
  }
  func.func @transform_0(%arg0: i32) -> (i32, i32) {
    %c0_i32 = arith.constant 0 : i32
    %c0_i32_0 = arith.constant 0 : i32
    return %arg0, %c0_i32 : i32, i32
  }
  func.func @transform_1(%arg0: i32) -> (i32, i32) {
    %c0_i32 = arith.constant 0 : i32
    %c0_i32_0 = arith.constant 0 : i32
    %c0_i32_1 = arith.constant 0 : i32
    return %c0_i32, %c0_i32_0 : i32, i32
  }
  func.func @transform_2(%arg0: i32) -> (i32, i32) {
    %c0_i32 = arith.constant 0 : i32
    %c0_i32_0 = arith.constant 0 : i32
    %c0_i32_1 = arith.constant 0 : i32
    return %c0_i32, %c0_i32_0 : i32, i32
  }
  func.func @transform_3(%arg0: i32) -> (i32, i32) {
    %c0_i32 = arith.constant 0 : i32
    %c0_i32_0 = arith.constant 0 : i32
    return %arg0, %c0_i32 : i32, i32
  }
}

module attributes {stable_mosaic.version = 11 : i64} {
  func.func @_attention_kernel(%arg0: i32, %arg1: memref<1x8x96xbf16, #tpu.memory_space<vmem>>, %arg2: memref<1x1x8xf32, #tpu.memory_space<vmem>>, %arg3: memref<1x8x32xbf16, #tpu.memory_space<vmem>>) attributes {dimension_semantics = [#tpu.dimension_semantics<parallel>], iteration_bounds = array<i64: 2>, scalar_prefetch = 0 : i64, scratch_operands = 0 : i64, tpu.core_type = #tpu.core_type<tc>, window_params = [{transform_indices = @transform_0, window_bounds = array<i64: 1, 8, 96>}, {transform_indices = @transform_1, window_bounds = array<i64: 1, 1, 8>}, {transform_indices = @transform_2, window_bounds = array<i64: 1, 8, 32>}]} {
    %c0 = arith.constant 0 : index
    %c0_0 = arith.constant 0 : index
    %c0_1 = arith.constant 0 : index
    %0 = vector.load %arg2[%c0, %c0_0, %c0_1] : memref<1x1x8xf32, #tpu.memory_space<vmem>>, vector<1x1x8xf32>
    %1 = vector.shape_cast %0 : vector<1x1x8xf32> to vector<1x8xf32>
    %c0_2 = arith.constant 0 : index
    %c0_3 = arith.constant 0 : index
    %c0_4 = arith.constant 0 : index
    %2 = vector.load %arg1[%c0_2, %c0_3, %c0_4] : memref<1x8x96xbf16, #tpu.memory_space<vmem>>, vector<1x8x8xbf16>
    %3 = vector.shape_cast %2 : vector<1x8x8xbf16> to vector<8x8xbf16>
    %c0_5 = arith.constant 0 : index
    %c0_6 = arith.constant 0 : index
    %c32 = arith.constant 32 : index
    %4 = vector.load %arg1[%c0_5, %c0_6, %c32] : memref<1x8x96xbf16, #tpu.memory_space<vmem>>, vector<1x8x8xbf16>
    %5 = vector.shape_cast %4 : vector<1x8x8xbf16> to vector<8x8xbf16>
    %c0_7 = arith.constant 0 : index
    %c0_8 = arith.constant 0 : index
    %c64 = arith.constant 64 : index
    %6 = vector.load %arg1[%c0_7, %c0_8, %c64] : memref<1x8x96xbf16, #tpu.memory_space<vmem>>, vector<1x8x8xbf16>
    %7 = vector.shape_cast %6 : vector<1x8x8xbf16> to vector<8x8xbf16>
    %cst = arith.constant dense<0.000000e+00> : vector<8x8xf32>
    %8 = tpu.matmul %3, %5, %cst {dimension_numbers = #tpu.dot_dimension_numbers<[1], [1], [0], [0], [0, 0, 1, 0], [], []>} : vector<8x8xbf16>, vector<8x8xbf16>, vector<8x8xf32> -> vector<8x8xf32>
    %9 = vector.broadcast %1 : vector<1x8xf32> to vector<8x8xf32>
    %10 = arith.addf %8, %9 : vector<8x8xf32>
    %cst_9 = arith.constant dense<0xFF800000> : vector<8xf32>
    %11 = vector.multi_reduction <maximumf>, %10, %cst_9 [1] : vector<8x8xf32> to vector<8xf32>
    %12 = vector.shape_cast %11 : vector<8xf32> to vector<8x1xf32>
    %13 = vector.broadcast %12 : vector<8x1xf32> to vector<8x8xf32>
    %14 = arith.subf %10, %13 : vector<8x8xf32>
    %15 = math.exp %14 : vector<8x8xf32>
    %cst_10 = arith.constant dense<0.000000e+00> : vector<8xf32>
    %16 = vector.multi_reduction <add>, %15, %cst_10 [1] : vector<8x8xf32> to vector<8xf32>
    %17 = vector.shape_cast %16 : vector<8xf32> to vector<8x1xf32>
    %18 = tpu.reciprocal %17 {approx = true} : vector<8x1xf32> -> vector<8x1xf32>
    %19 = vector.broadcast %18 : vector<8x1xf32> to vector<8x8xf32>
    %20 = arith.mulf %15, %19 : vector<8x8xf32>
    %21 = arith.truncf %20 : vector<8x8xf32> to vector<8x8xbf16>
    %cst_11 = arith.constant dense<0.000000e+00> : vector<8x8xf32>
    %22 = tpu.matmul %21, %7, %cst_11 {dimension_numbers = #tpu.dot_dimension_numbers<[1], [0], [0], [1], [0, 0, 1, 1], [], []>} : vector<8x8xbf16>, vector<8x8xbf16>, vector<8x8xf32> -> vector<8x8xf32>
    %c0_12 = arith.constant 0 : index
    %c0_13 = arith.constant 0 : index
    %c8 = arith.constant 8 : index
    %23 = vector.load %arg1[%c0_12, %c0_13, %c8] : memref<1x8x96xbf16, #tpu.memory_space<vmem>>, vector<1x8x8xbf16>
    %24 = vector.shape_cast %23 : vector<1x8x8xbf16> to vector<8x8xbf16>
    %c0_14 = arith.constant 0 : index
    %c0_15 = arith.constant 0 : index
    %c40 = arith.constant 40 : index
    %25 = vector.load %arg1[%c0_14, %c0_15, %c40] : memref<1x8x96xbf16, #tpu.memory_space<vmem>>, vector<1x8x8xbf16>
    %26 = vector.shape_cast %25 : vector<1x8x8xbf16> to vector<8x8xbf16>
    %c0_16 = arith.constant 0 : index
    %c0_17 = arith.constant 0 : index
    %c72 = arith.constant 72 : index
    %27 = vector.load %arg1[%c0_16, %c0_17, %c72] : memref<1x8x96xbf16, #tpu.memory_space<vmem>>, vector<1x8x8xbf16>
    %28 = vector.shape_cast %27 : vector<1x8x8xbf16> to vector<8x8xbf16>
    %cst_18 = arith.constant dense<0.000000e+00> : vector<8x8xf32>
    %29 = tpu.matmul %24, %26, %cst_18 {dimension_numbers = #tpu.dot_dimension_numbers<[1], [1], [0], [0], [0, 0, 1, 0], [], []>} : vector<8x8xbf16>, vector<8x8xbf16>, vector<8x8xf32> -> vector<8x8xf32>
    %30 = vector.broadcast %1 : vector<1x8xf32> to vector<8x8xf32>
    %31 = arith.addf %29, %30 : vector<8x8xf32>
    %cst_19 = arith.constant dense<0xFF800000> : vector<8xf32>
    %32 = vector.multi_reduction <maximumf>, %31, %cst_19 [1] : vector<8x8xf32> to vector<8xf32>
    %33 = vector.shape_cast %32 : vector<8xf32> to vector<8x1xf32>
    %34 = vector.broadcast %33 : vector<8x1xf32> to vector<8x8xf32>
    %35 = arith.subf %31, %34 : vector<8x8xf32>
    %36 = math.exp %35 : vector<8x8xf32>
    %cst_20 = arith.constant dense<0.000000e+00> : vector<8xf32>
    %37 = vector.multi_reduction <add>, %36, %cst_20 [1] : vector<8x8xf32> to vector<8xf32>
    %38 = vector.shape_cast %37 : vector<8xf32> to vector<8x1xf32>
    %39 = tpu.reciprocal %38 {approx = true} : vector<8x1xf32> -> vector<8x1xf32>
    %40 = vector.broadcast %39 : vector<8x1xf32> to vector<8x8xf32>
    %41 = arith.mulf %36, %40 : vector<8x8xf32>
    %42 = arith.truncf %41 : vector<8x8xf32> to vector<8x8xbf16>
    %cst_21 = arith.constant dense<0.000000e+00> : vector<8x8xf32>
    %43 = tpu.matmul %42, %28, %cst_21 {dimension_numbers = #tpu.dot_dimension_numbers<[1], [0], [0], [1], [0, 0, 1, 1], [], []>} : vector<8x8xbf16>, vector<8x8xbf16>, vector<8x8xf32> -> vector<8x8xf32>
    %c0_22 = arith.constant 0 : index
    %c0_23 = arith.constant 0 : index
    %c16 = arith.constant 16 : index
    %44 = vector.load %arg1[%c0_22, %c0_23, %c16] : memref<1x8x96xbf16, #tpu.memory_space<vmem>>, vector<1x8x8xbf16>
    %45 = vector.shape_cast %44 : vector<1x8x8xbf16> to vector<8x8xbf16>
    %c0_24 = arith.constant 0 : index
    %c0_25 = arith.constant 0 : index
    %c48 = arith.constant 48 : index
    %46 = vector.load %arg1[%c0_24, %c0_25, %c48] : memref<1x8x96xbf16, #tpu.memory_space<vmem>>, vector<1x8x8xbf16>
    %47 = vector.shape_cast %46 : vector<1x8x8xbf16> to vector<8x8xbf16>
    %c0_26 = arith.constant 0 : index
    %c0_27 = arith.constant 0 : index
    %c80 = arith.constant 80 : index
    %48 = vector.load %arg1[%c0_26, %c0_27, %c80] : memref<1x8x96xbf16, #tpu.memory_space<vmem>>, vector<1x8x8xbf16>
    %49 = vector.shape_cast %48 : vector<1x8x8xbf16> to vector<8x8xbf16>
    %cst_28 = arith.constant dense<0.000000e+00> : vector<8x8xf32>
    %50 = tpu.matmul %45, %47, %cst_28 {dimension_numbers = #tpu.dot_dimension_numbers<[1], [1], [0], [0], [0, 0, 1, 0], [], []>} : vector<8x8xbf16>, vector<8x8xbf16>, vector<8x8xf32> -> vector<8x8xf32>
    %51 = vector.broadcast %1 : vector<1x8xf32> to vector<8x8xf32>
    %52 = arith.addf %50, %51 : vector<8x8xf32>
    %cst_29 = arith.constant dense<0xFF800000> : vector<8xf32>
    %53 = vector.multi_reduction <maximumf>, %52, %cst_29 [1] : vector<8x8xf32> to vector<8xf32>
    %54 = vector.shape_cast %53 : vector<8xf32> to vector<8x1xf32>
    %55 = vector.broadcast %54 : vector<8x1xf32> to vector<8x8xf32>
    %56 = arith.subf %52, %55 : vector<8x8xf32>
    %57 = math.exp %56 : vector<8x8xf32>
    %cst_30 = arith.constant dense<0.000000e+00> : vector<8xf32>
    %58 = vector.multi_reduction <add>, %57, %cst_30 [1] : vector<8x8xf32> to vector<8xf32>
    %59 = vector.shape_cast %58 : vector<8xf32> to vector<8x1xf32>
    %60 = tpu.reciprocal %59 {approx = true} : vector<8x1xf32> -> vector<8x1xf32>
    %61 = vector.broadcast %60 : vector<8x1xf32> to vector<8x8xf32>
    %62 = arith.mulf %57, %61 : vector<8x8xf32>
    %63 = arith.truncf %62 : vector<8x8xf32> to vector<8x8xbf16>
    %cst_31 = arith.constant dense<0.000000e+00> : vector<8x8xf32>
    %64 = tpu.matmul %63, %49, %cst_31 {dimension_numbers = #tpu.dot_dimension_numbers<[1], [0], [0], [1], [0, 0, 1, 1], [], []>} : vector<8x8xbf16>, vector<8x8xbf16>, vector<8x8xf32> -> vector<8x8xf32>
    %c0_32 = arith.constant 0 : index
    %c0_33 = arith.constant 0 : index
    %c24 = arith.constant 24 : index
    %65 = vector.load %arg1[%c0_32, %c0_33, %c24] : memref<1x8x96xbf16, #tpu.memory_space<vmem>>, vector<1x8x8xbf16>
    %66 = vector.shape_cast %65 : vector<1x8x8xbf16> to vector<8x8xbf16>
    %c0_34 = arith.constant 0 : index
    %c0_35 = arith.constant 0 : index
    %c56 = arith.constant 56 : index
    %67 = vector.load %arg1[%c0_34, %c0_35, %c56] : memref<1x8x96xbf16, #tpu.memory_space<vmem>>, vector<1x8x8xbf16>
    %68 = vector.shape_cast %67 : vector<1x8x8xbf16> to vector<8x8xbf16>
    %c0_36 = arith.constant 0 : index
    %c0_37 = arith.constant 0 : index
    %c88 = arith.constant 88 : index
    %69 = vector.load %arg1[%c0_36, %c0_37, %c88] : memref<1x8x96xbf16, #tpu.memory_space<vmem>>, vector<1x8x8xbf16>
    %70 = vector.shape_cast %69 : vector<1x8x8xbf16> to vector<8x8xbf16>
    %cst_38 = arith.constant dense<0.000000e+00> : vector<8x8xf32>
    %71 = tpu.matmul %66, %68, %cst_38 {dimension_numbers = #tpu.dot_dimension_numbers<[1], [1], [0], [0], [0, 0, 1, 0], [], []>} : vector<8x8xbf16>, vector<8x8xbf16>, vector<8x8xf32> -> vector<8x8xf32>
    %72 = vector.broadcast %1 : vector<1x8xf32> to vector<8x8xf32>
    %73 = arith.addf %71, %72 : vector<8x8xf32>
    %cst_39 = arith.constant dense<0xFF800000> : vector<8xf32>
    %74 = vector.multi_reduction <maximumf>, %73, %cst_39 [1] : vector<8x8xf32> to vector<8xf32>
    %75 = vector.shape_cast %74 : vector<8xf32> to vector<8x1xf32>
    %76 = vector.broadcast %75 : vector<8x1xf32> to vector<8x8xf32>
    %77 = arith.subf %73, %76 : vector<8x8xf32>
    %78 = math.exp %77 : vector<8x8xf32>
    %cst_40 = arith.constant dense<0.000000e+00> : vector<8xf32>
    %79 = vector.multi_reduction <add>, %78, %cst_40 [1] : vector<8x8xf32> to vector<8xf32>
    %80 = vector.shape_cast %79 : vector<8xf32> to vector<8x1xf32>
    %81 = tpu.reciprocal %80 {approx = true} : vector<8x1xf32> -> vector<8x1xf32>
    %82 = vector.broadcast %81 : vector<8x1xf32> to vector<8x8xf32>
    %83 = arith.mulf %78, %82 : vector<8x8xf32>
    %84 = arith.truncf %83 : vector<8x8xf32> to vector<8x8xbf16>
    %cst_41 = arith.constant dense<0.000000e+00> : vector<8x8xf32>
    %85 = tpu.matmul %84, %70, %cst_41 {dimension_numbers = #tpu.dot_dimension_numbers<[1], [0], [0], [1], [0, 0, 1, 1], [], []>} : vector<8x8xbf16>, vector<8x8xbf16>, vector<8x8xf32> -> vector<8x8xf32>
    %86 = tpu.concatenate %22, %43, %64, %85 in 1 : vector<8x8xf32>, vector<8x8xf32>, vector<8x8xf32>, vector<8x8xf32> -> vector<8x32xf32>
    %87 = arith.truncf %86 : vector<8x32xf32> to vector<8x32xbf16>
    %c0_42 = arith.constant 0 : index
    %c0_43 = arith.constant 0 : index
    %c0_44 = arith.constant 0 : index
    %88 = vector.load %arg3[%c0_42, %c0_43, %c0_44] : memref<1x8x32xbf16, #tpu.memory_space<vmem>>, vector<1x8x32xbf16>
    %89 = vector.shape_cast %88 : vector<1x8x32xbf16> to vector<8x32xbf16>
    %90 = vector.shape_cast %87 : vector<8x32xbf16> to vector<1x8x32xbf16>
    tpu.vector_store %arg3[%c0_42, %c0_43, %c0_44], %90 {strides = array<i32>} : memref<1x8x32xbf16, #tpu.memory_space<vmem>>, vector<1x8x32xbf16>,
    return
  }
  func.func @transform_0(%arg0: i32) -> (i32, i32, i32) {
    %c0_i32 = arith.constant 0 : i32
    %c0_i32_0 = arith.constant 0 : i32
    %c0_i32_1 = arith.constant 0 : i32
    return %arg0, %c0_i32, %c0_i32_0 : i32, i32, i32
  }
  func.func @transform_1(%arg0: i32) -> (i32, i32, i32) {
    %c0_i32 = arith.constant 0 : i32
    %c0_i32_0 = arith.constant 0 : i32
    %c0_i32_1 = arith.constant 0 : i32
    return %arg0, %c0_i32, %c0_i32_0 : i32, i32, i32
  }
  func.func @transform_2(%arg0: i32) -> (i32, i32, i32) {
    %c0_i32 = arith.constant 0 : i32
    %c0_i32_0 = arith.constant 0 : i32
    %c0_i32_1 = arith.constant 0 : i32
    return %arg0, %c0_i32, %c0_i32_0 : i32, i32, i32
  }
}

module attributes {stable_mosaic.version = 11 : i64} {
  func.func @_dense_kernel(%arg0: i32, %arg1: i32, %arg2: i32, %arg3: memref<16x32xbf16, #tpu.memory_space<vmem>>, %arg4: memref<32x32xbf16, #tpu.memory_space<vmem>>, %arg5: memref<1x32xf32, #tpu.memory_space<vmem>>, %arg6: memref<16x32xbf16, #tpu.memory_space<vmem>>, %arg7: memref<16x32xf32, #tpu.memory_space<vmem>>) attributes {dimension_semantics = [#tpu.dimension_semantics<parallel>, #tpu.dimension_semantics<parallel>, #tpu.dimension_semantics<arbitrary>], iteration_bounds = array<i64: 1, 1, 1>, scalar_prefetch = 0 : i64, scratch_operands = 1 : i64, tpu.core_type = #tpu.core_type<tc>, window_params = [{transform_indices = @transform_0, window_bounds = array<i64: 16, 32>}, {transform_indices = @transform_1, window_bounds = array<i64: 32, 32>}, {transform_indices = @transform_2, window_bounds = array<i64: 1, 32>}, {transform_indices = @transform_3, window_bounds = array<i64: 16, 32>}]} {
    %c0_i32 = arith.constant 0 : i32
    %0 = arith.cmpi eq, %arg2, %c0_i32 : i32
    %1 = arith.extui %0 : i1 to i32
    %c0_i32_0 = arith.constant 0 : i32
    %2 = arith.cmpi ne, %1, %c0_i32_0 : i32
    scf.if %2 {
      %cst_10 = arith.constant 0.000000e+00 : f32
      %12 = vector.broadcast %cst_10 : f32 to vector<16x32xf32>
      %c0_11 = arith.constant 0 : index
      %c0_12 = arith.constant 0 : index
      %13 = vector.load %arg7[%c0_11, %c0_12] : memref<16x32xf32, #tpu.memory_space<vmem>>, vector<16x32xf32>
      tpu.vector_store %arg7[%c0_11, %c0_12], %12 {strides = array<i32>} : memref<16x32xf32, #tpu.memory_space<vmem>>, vector<16x32xf32>,
    } else {
    }
    %c0 = arith.constant 0 : index
    %c0_1 = arith.constant 0 : index
    %3 = vector.load %arg7[%c0, %c0_1] : memref<16x32xf32, #tpu.memory_space<vmem>>, vector<16x32xf32>
    %c0_2 = arith.constant 0 : index
    %c0_3 = arith.constant 0 : index
    %4 = vector.load %arg3[%c0_2, %c0_3] : memref<16x32xbf16, #tpu.memory_space<vmem>>, vector<16x32xbf16>
    %c0_4 = arith.constant 0 : index
    %c0_5 = arith.constant 0 : index
    %5 = vector.load %arg4[%c0_4, %c0_5] : memref<32x32xbf16, #tpu.memory_space<vmem>>, vector<32x32xbf16>
    %cst = arith.constant dense<0.000000e+00> : vector<16x32xf32>
    %6 = tpu.matmul %4, %5, %cst {dimension_numbers = #tpu.dot_dimension_numbers<[1], [0], [0], [1], [0, 0, 1, 1], [], []>} : vector<16x32xbf16>, vector<32x32xbf16>, vector<16x32xf32> -> vector<16x32xf32>
    %7 = arith.addf %3, %6 : vector<16x32xf32>
    %c0_6 = arith.constant 0 : index
    %c0_7 = arith.constant 0 : index
    %8 = vector.load %arg7[%c0_6, %c0_7] : memref<16x32xf32, #tpu.memory_space<vmem>>, vector<16x32xf32>
    tpu.vector_store %arg7[%c0_6, %c0_7], %7 {strides = array<i32>} : memref<16x32xf32, #tpu.memory_space<vmem>>, vector<16x32xf32>,
    %c0_i32_8 = arith.constant 0 : i32
    %9 = arith.cmpi eq, %arg2, %c0_i32_8 : i32
    %10 = arith.extui %9 : i1 to i32
    %c0_i32_9 = arith.constant 0 : i32
    %11 = arith.cmpi ne, %10, %c0_i32_9 : i32
    scf.if %11 {
      %c0_10 = arith.constant 0 : index
      %c0_11 = arith.constant 0 : index
      %12 = vector.load %arg7[%c0_10, %c0_11] : memref<16x32xf32, #tpu.memory_space<vmem>>, vector<16x32xf32>
      %c0_12 = arith.constant 0 : index
      %c0_13 = arith.constant 0 : index
      %13 = vector.load %arg5[%c0_12, %c0_13] : memref<1x32xf32, #tpu.memory_space<vmem>>, vector<1x32xf32>
      %14 = vector.broadcast %13 : vector<1x32xf32> to vector<16x32xf32>
      %15 = arith.addf %12, %14 : vector<16x32xf32>
      %16 = arith.truncf %15 : vector<16x32xf32> to vector<16x32xbf16>
      %c0_14 = arith.constant 0 : index
      %c0_15 = arith.constant 0 : index
      %17 = vector.load %arg6[%c0_14, %c0_15] : memref<16x32xbf16, #tpu.memory_space<vmem>>, vector<16x32xbf16>
      tpu.vector_store %arg6[%c0_14, %c0_15], %16 {strides = array<i32>} : memref<16x32xbf16, #tpu.memory_space<vmem>>, vector<16x32xbf16>,
    } else {
    }
    return
  }
  func.func @transform_0(%arg0: i32, %arg1: i32, %arg2: i32) -> (i32, i32) {
    %c0_i32 = arith.constant 0 : i32
    return %arg0, %arg2 : i32, i32
  }
  func.func @transform_1(%arg0: i32, %arg1: i32, %arg2: i32) -> (i32, i32) {
    %c0_i32 = arith.constant 0 : i32
    return %arg2, %arg1 : i32, i32
  }
  func.func @transform_2(%arg0: i32, %arg1: i32, %arg2: i32) -> (i32, i32) {
    %c0_i32 = arith.constant 0 : i32
    %c0_i32_0 = arith.constant 0 : i32
    return %c0_i32, %arg1 : i32, i32
  }
  func.func @transform_3(%arg0: i32, %arg1: i32, %arg2: i32) -> (i32, i32) {
    %c0_i32 = arith.constant 0 : i32
    return %arg0, %arg1 : i32, i32
  }
}

module attributes {stable_mosaic.version = 11 : i64} {
  func.func @_add_layernorm_kernel(%arg0: i32, %arg1: memref<16x32xbf16, #tpu.memory_space<vmem>>, %arg2: memref<16x32xbf16, #tpu.memory_space<vmem>>, %arg3: memref<1x32xf32, #tpu.memory_space<vmem>>, %arg4: memref<1x32xf32, #tpu.memory_space<vmem>>, %arg5: memref<16x32xbf16, #tpu.memory_space<vmem>>) attributes {dimension_semantics = [#tpu.dimension_semantics<parallel>], iteration_bounds = array<i64: 1>, scalar_prefetch = 0 : i64, scratch_operands = 0 : i64, tpu.core_type = #tpu.core_type<tc>, window_params = [{transform_indices = @transform_0, window_bounds = array<i64: 16, 32>}, {transform_indices = @transform_1, window_bounds = array<i64: 16, 32>}, {pipeline_mode = #tpu.pipeline_mode<synchronous>, transform_indices = @transform_2, window_bounds = array<i64: 1, 32>}, {pipeline_mode = #tpu.pipeline_mode<synchronous>, transform_indices = @transform_3, window_bounds = array<i64: 1, 32>}, {transform_indices = @transform_4, window_bounds = array<i64: 16, 32>}]} {
    %c0 = arith.constant 0 : index
    %c0_0 = arith.constant 0 : index
    %0 = vector.load %arg1[%c0, %c0_0] : memref<16x32xbf16, #tpu.memory_space<vmem>>, vector<16x32xbf16>
    %1 = arith.extf %0 : vector<16x32xbf16> to vector<16x32xf32>
    %c0_1 = arith.constant 0 : index
    %c0_2 = arith.constant 0 : index
    %2 = vector.load %arg2[%c0_1, %c0_2] : memref<16x32xbf16, #tpu.memory_space<vmem>>, vector<16x32xbf16>
    %3 = arith.extf %2 : vector<16x32xbf16> to vector<16x32xf32>
    %4 = arith.addf %1, %3 : vector<16x32xf32>
    %cst = arith.constant dense<0.000000e+00> : vector<16xf32>
    %5 = vector.multi_reduction <add>, %4, %cst [1] : vector<16x32xf32> to vector<16xf32>
    %6 = vector.shape_cast %5 : vector<16xf32> to vector<16x1xf32>
    %cst_3 = arith.constant 3.200000e+01 : f32
    %7 = vector.broadcast %cst_3 : f32 to vector<16x1xf32>
    %8 = arith.divf %6, %7 : vector<16x1xf32>
    %9 = vector.broadcast %8 : vector<16x1xf32> to vector<16x32xf32>
    %10 = arith.subf %4, %9 : vector<16x32xf32>
    %11 = arith.mulf %10, %10 : vector<16x32xf32>
    %cst_4 = arith.constant dense<0.000000e+00> : vector<16xf32>
    %12 = vector.multi_reduction <add>, %11, %cst_4 [1] : vector<16x32xf32> to vector<16xf32>
    %13 = vector.shape_cast %12 : vector<16xf32> to vector<16x1xf32>
    %cst_5 = arith.constant 3.200000e+01 : f32
    %14 = vector.broadcast %cst_5 : f32 to vector<16x1xf32>
    %15 = arith.divf %13, %14 : vector<16x1xf32>
    %cst_6 = arith.constant 9.99999996E-13 : f32
    %16 = vector.broadcast %cst_6 : f32 to vector<16x1xf32>
    %17 = arith.addf %15, %16 : vector<16x1xf32>
    %18 = math.rsqrt %17 : vector<16x1xf32>
    %19 = vector.broadcast %8 : vector<16x1xf32> to vector<16x32xf32>
    %20 = arith.subf %4, %19 : vector<16x32xf32>
    %21 = vector.broadcast %18 : vector<16x1xf32> to vector<16x32xf32>
    %22 = arith.mulf %20, %21 : vector<16x32xf32>
    %c0_7 = arith.constant 0 : index
    %c0_8 = arith.constant 0 : index
    %23 = vector.load %arg3[%c0_7, %c0_8] : memref<1x32xf32, #tpu.memory_space<vmem>>, vector<1x32xf32>
    %24 = vector.broadcast %23 : vector<1x32xf32> to vector<16x32xf32>
    %25 = arith.mulf %22, %24 : vector<16x32xf32>
    %c0_9 = arith.constant 0 : index
    %c0_10 = arith.constant 0 : index
    %26 = vector.load %arg4[%c0_9, %c0_10] : memref<1x32xf32, #tpu.memory_space<vmem>>, vector<1x32xf32>
    %27 = vector.broadcast %26 : vector<1x32xf32> to vector<16x32xf32>
    %28 = arith.addf %25, %27 : vector<16x32xf32>
    %29 = arith.truncf %28 : vector<16x32xf32> to vector<16x32xbf16>
    %c0_11 = arith.constant 0 : index
    %c0_12 = arith.constant 0 : index
    %30 = vector.load %arg5[%c0_11, %c0_12] : memref<16x32xbf16, #tpu.memory_space<vmem>>, vector<16x32xbf16>
    tpu.vector_store %arg5[%c0_11, %c0_12], %29 {strides = array<i32>} : memref<16x32xbf16, #tpu.memory_space<vmem>>, vector<16x32xbf16>,
    return
  }
  func.func @transform_0(%arg0: i32) -> (i32, i32) {
    %c0_i32 = arith.constant 0 : i32
    %c0_i32_0 = arith.constant 0 : i32
    return %arg0, %c0_i32 : i32, i32
  }
  func.func @transform_1(%arg0: i32) -> (i32, i32) {
    %c0_i32 = arith.constant 0 : i32
    %c0_i32_0 = arith.constant 0 : i32
    return %arg0, %c0_i32 : i32, i32
  }
  func.func @transform_2(%arg0: i32) -> (i32, i32) {
    %c0_i32 = arith.constant 0 : i32
    %c0_i32_0 = arith.constant 0 : i32
    %c0_i32_1 = arith.constant 0 : i32
    return %c0_i32, %c0_i32_0 : i32, i32
  }
  func.func @transform_3(%arg0: i32) -> (i32, i32) {
    %c0_i32 = arith.constant 0 : i32
    %c0_i32_0 = arith.constant 0 : i32
    %c0_i32_1 = arith.constant 0 : i32
    return %c0_i32, %c0_i32_0 : i32, i32
  }
  func.func @transform_4(%arg0: i32) -> (i32, i32) {
    %c0_i32 = arith.constant 0 : i32
    %c0_i32_0 = arith.constant 0 : i32
    return %arg0, %c0_i32 : i32, i32
  }
}

module attributes {stable_mosaic.version = 11 : i64} {
  func.func @_ffn_kernel(%arg0: i32, %arg1: i32, %arg2: memref<16x32xbf16, #tpu.memory_space<vmem>>, %arg3: memref<32x64xbf16, #tpu.memory_space<vmem>>, %arg4: memref<1x64xf32, #tpu.memory_space<vmem>>, %arg5: memref<64x32xbf16, #tpu.memory_space<vmem>>, %arg6: memref<1x32xf32, #tpu.memory_space<vmem>>, %arg7: memref<16x32xbf16, #tpu.memory_space<vmem>>, %arg8: memref<16x32xf32, #tpu.memory_space<vmem>>) attributes {dimension_semantics = [#tpu.dimension_semantics<parallel>, #tpu.dimension_semantics<arbitrary>], iteration_bounds = array<i64: 1, 1>, scalar_prefetch = 0 : i64, scratch_operands = 1 : i64, tpu.core_type = #tpu.core_type<tc>, window_params = [{transform_indices = @transform_0, window_bounds = array<i64: 16, 32>}, {transform_indices = @transform_1, window_bounds = array<i64: 32, 64>}, {transform_indices = @transform_2, window_bounds = array<i64: 1, 64>}, {transform_indices = @transform_3, window_bounds = array<i64: 64, 32>}, {pipeline_mode = #tpu.pipeline_mode<synchronous>, transform_indices = @transform_4, window_bounds = array<i64: 1, 32>}, {transform_indices = @transform_5, window_bounds = array<i64: 16, 32>}]} {
    %c0_i32 = arith.constant 0 : i32
    %0 = arith.cmpi eq, %arg1, %c0_i32 : i32
    %1 = arith.extui %0 : i1 to i32
    %c0_i32_0 = arith.constant 0 : i32
    %2 = arith.cmpi ne, %1, %c0_i32_0 : i32
    scf.if %2 {
      %cst_18 = arith.constant 0.000000e+00 : f32
      %26 = vector.broadcast %cst_18 : f32 to vector<16x32xf32>
      %c0_19 = arith.constant 0 : index
      %c0_20 = arith.constant 0 : index
      %27 = vector.load %arg8[%c0_19, %c0_20] : memref<16x32xf32, #tpu.memory_space<vmem>>, vector<16x32xf32>
      tpu.vector_store %arg8[%c0_19, %c0_20], %26 {strides = array<i32>} : memref<16x32xf32, #tpu.memory_space<vmem>>, vector<16x32xf32>,
    } else {
    }
    %c0 = arith.constant 0 : index
    %c0_1 = arith.constant 0 : index
    %3 = vector.load %arg2[%c0, %c0_1] : memref<16x32xbf16, #tpu.memory_space<vmem>>, vector<16x32xbf16>
    %c0_2 = arith.constant 0 : index
    %c0_3 = arith.constant 0 : index
    %4 = vector.load %arg3[%c0_2, %c0_3] : memref<32x64xbf16, #tpu.memory_space<vmem>>, vector<32x64xbf16>
    %cst = arith.constant dense<0.000000e+00> : vector<16x64xf32>
    %5 = tpu.matmul %3, %4, %cst {dimension_numbers = #tpu.dot_dimension_numbers<[1], [0], [0], [1], [0, 0, 1, 1], [], []>} : vector<16x32xbf16>, vector<32x64xbf16>, vector<16x64xf32> -> vector<16x64xf32>
    %c0_4 = arith.constant 0 : index
    %c0_5 = arith.constant 0 : index
    %6 = vector.load %arg4[%c0_4, %c0_5] : memref<1x64xf32, #tpu.memory_space<vmem>>, vector<1x64xf32>
    %7 = vector.broadcast %6 : vector<1x64xf32> to vector<16x64xf32>
    %8 = arith.addf %5, %7 : vector<16x64xf32>
    %cst_6 = arith.constant 5.000000e-01 : f32
    %9 = vector.broadcast %cst_6 : f32 to vector<16x64xf32>
    %10 = arith.mulf %9, %8 : vector<16x64xf32>
    %cst_7 = arith.constant 0.707106769 : f32
    %11 = vector.broadcast %cst_7 : f32 to vector<16x64xf32>
    %12 = arith.mulf %8, %11 : vector<16x64xf32>
    %13 = math.erf %12 : vector<16x64xf32>
    %cst_8 = arith.constant 1.000000e+00 : f32
    %14 = vector.broadcast %cst_8 : f32 to vector<16x64xf32>
    %15 = arith.addf %14, %13 : vector<16x64xf32>
    %16 = arith.mulf %10, %15 : vector<16x64xf32>
    %c0_9 = arith.constant 0 : index
    %c0_10 = arith.constant 0 : index
    %17 = vector.load %arg8[%c0_9, %c0_10] : memref<16x32xf32, #tpu.memory_space<vmem>>, vector<16x32xf32>
    %18 = arith.truncf %16 : vector<16x64xf32> to vector<16x64xbf16>
    %c0_11 = arith.constant 0 : index
    %c0_12 = arith.constant 0 : index
    %19 = vector.load %arg5[%c0_11, %c0_12] : memref<64x32xbf16, #tpu.memory_space<vmem>>, vector<64x32xbf16>
    %cst_13 = arith.constant dense<0.000000e+00> : vector<16x32xf32>
    %20 = tpu.matmul %18, %19, %cst_13 {dimension_numbers = #tpu.dot_dimension_numbers<[1], [0], [0], [1], [0, 0, 1, 1], [], []>} : vector<16x64xbf16>, vector<64x32xbf16>, vector<16x32xf32> -> vector<16x32xf32>
    %21 = arith.addf %17, %20 : vector<16x32xf32>
    %c0_14 = arith.constant 0 : index
    %c0_15 = arith.constant 0 : index
    %22 = vector.load %arg8[%c0_14, %c0_15] : memref<16x32xf32, #tpu.memory_space<vmem>>, vector<16x32xf32>
    tpu.vector_store %arg8[%c0_14, %c0_15], %21 {strides = array<i32>} : memref<16x32xf32, #tpu.memory_space<vmem>>, vector<16x32xf32>,
    %c0_i32_16 = arith.constant 0 : i32
    %23 = arith.cmpi eq, %arg1, %c0_i32_16 : i32
    %24 = arith.extui %23 : i1 to i32
    %c0_i32_17 = arith.constant 0 : i32
    %25 = arith.cmpi ne, %24, %c0_i32_17 : i32
    scf.if %25 {
      %c0_18 = arith.constant 0 : index
      %c0_19 = arith.constant 0 : index
      %26 = vector.load %arg8[%c0_18, %c0_19] : memref<16x32xf32, #tpu.memory_space<vmem>>, vector<16x32xf32>
      %c0_20 = arith.constant 0 : index
      %c0_21 = arith.constant 0 : index
      %27 = vector.load %arg6[%c0_20, %c0_21] : memref<1x32xf32, #tpu.memory_space<vmem>>, vector<1x32xf32>
      %28 = vector.broadcast %27 : vector<1x32xf32> to vector<16x32xf32>
      %29 = arith.addf %26, %28 : vector<16x32xf32>
      %30 = arith.truncf %29 : vector<16x32xf32> to vector<16x32xbf16>
      %c0_22 = arith.constant 0 : index
      %c0_23 = arith.constant 0 : index
      %31 = vector.load %arg7[%c0_22, %c0_23] : memref<16x32xbf16, #tpu.memory_space<vmem>>, vector<16x32xbf16>
      tpu.vector_store %arg7[%c0_22, %c0_23], %30 {strides = array<i32>} : memref<16x32xbf16, #tpu.memory_space<vmem>>, vector<16x32xbf16>,
    } else {
    }
    return
  }
  func.func @transform_0(%arg0: i32, %arg1: i32) -> (i32, i32) {
    %c0_i32 = arith.constant 0 : i32
    %c0_i32_0 = arith.constant 0 : i32
    return %arg0, %c0_i32 : i32, i32
  }
  func.func @transform_1(%arg0: i32, %arg1: i32) -> (i32, i32) {
    %c0_i32 = arith.constant 0 : i32
    %c0_i32_0 = arith.constant 0 : i32
    return %c0_i32, %arg1 : i32, i32
  }
  func.func @transform_2(%arg0: i32, %arg1: i32) -> (i32, i32) {
    %c0_i32 = arith.constant 0 : i32
    %c0_i32_0 = arith.constant 0 : i32
    return %c0_i32, %arg1 : i32, i32
  }
  func.func @transform_3(%arg0: i32, %arg1: i32) -> (i32, i32) {
    %c0_i32 = arith.constant 0 : i32
    %c0_i32_0 = arith.constant 0 : i32
    return %arg1, %c0_i32 : i32, i32
  }
  func.func @transform_4(%arg0: i32, %arg1: i32) -> (i32, i32) {
    %c0_i32 = arith.constant 0 : i32
    %c0_i32_0 = arith.constant 0 : i32
    %c0_i32_1 = arith.constant 0 : i32
    return %c0_i32, %c0_i32_0 : i32, i32
  }
  func.func @transform_5(%arg0: i32, %arg1: i32) -> (i32, i32) {
    %c0_i32 = arith.constant 0 : i32
    %c0_i32_0 = arith.constant 0 : i32
    return %arg0, %c0_i32 : i32, i32
  }
}

module attributes {stable_mosaic.version = 11 : i64} {
  func.func @_dense_kernel(%arg0: i32, %arg1: i32, %arg2: i32, %arg3: memref<2x32xbf16, #tpu.memory_space<vmem>>, %arg4: memref<32x128xbf16, #tpu.memory_space<vmem>>, %arg5: memref<1x128xf32, #tpu.memory_space<vmem>>, %arg6: memref<2x128xf32, #tpu.memory_space<vmem>>, %arg7: memref<2x128xf32, #tpu.memory_space<vmem>>) attributes {dimension_semantics = [#tpu.dimension_semantics<parallel>, #tpu.dimension_semantics<parallel>, #tpu.dimension_semantics<arbitrary>], iteration_bounds = array<i64: 1, 1, 1>, scalar_prefetch = 0 : i64, scratch_operands = 1 : i64, tpu.core_type = #tpu.core_type<tc>, window_params = [{transform_indices = @transform_0, window_bounds = array<i64: 2, 32>}, {transform_indices = @transform_1, window_bounds = array<i64: 32, 128>}, {transform_indices = @transform_2, window_bounds = array<i64: 1, 128>}, {transform_indices = @transform_3, window_bounds = array<i64: 2, 128>}]} {
    %c0_i32 = arith.constant 0 : i32
    %0 = arith.cmpi eq, %arg2, %c0_i32 : i32
    %1 = arith.extui %0 : i1 to i32
    %c0_i32_0 = arith.constant 0 : i32
    %2 = arith.cmpi ne, %1, %c0_i32_0 : i32
    scf.if %2 {
      %cst_10 = arith.constant 0.000000e+00 : f32
      %12 = vector.broadcast %cst_10 : f32 to vector<2x128xf32>
      %c0_11 = arith.constant 0 : index
      %c0_12 = arith.constant 0 : index
      %13 = vector.load %arg7[%c0_11, %c0_12] : memref<2x128xf32, #tpu.memory_space<vmem>>, vector<2x128xf32>
      tpu.vector_store %arg7[%c0_11, %c0_12], %12 {strides = array<i32>} : memref<2x128xf32, #tpu.memory_space<vmem>>, vector<2x128xf32>,
    } else {
    }
    %c0 = arith.constant 0 : index
    %c0_1 = arith.constant 0 : index
    %3 = vector.load %arg7[%c0, %c0_1] : memref<2x128xf32, #tpu.memory_space<vmem>>, vector<2x128xf32>
    %c0_2 = arith.constant 0 : index
    %c0_3 = arith.constant 0 : index
    %4 = vector.load %arg3[%c0_2, %c0_3] : memref<2x32xbf16, #tpu.memory_space<vmem>>, vector<2x32xbf16>
    %c0_4 = arith.constant 0 : index
    %c0_5 = arith.constant 0 : index
    %5 = vector.load %arg4[%c0_4, %c0_5] : memref<32x128xbf16, #tpu.memory_space<vmem>>, vector<32x128xbf16>
    %cst = arith.constant dense<0.000000e+00> : vector<2x128xf32>
    %6 = tpu.matmul %4, %5, %cst {dimension_numbers = #tpu.dot_dimension_numbers<[1], [0], [0], [1], [0, 0, 1, 1], [], []>} : vector<2x32xbf16>, vector<32x128xbf16>, vector<2x128xf32> -> vector<2x128xf32>
    %7 = arith.addf %3, %6 : vector<2x128xf32>
    %c0_6 = arith.constant 0 : index
    %c0_7 = arith.constant 0 : index
    %8 = vector.load %arg7[%c0_6, %c0_7] : memref<2x128xf32, #tpu.memory_space<vmem>>, vector<2x128xf32>
    tpu.vector_store %arg7[%c0_6, %c0_7], %7 {strides = array<i32>} : memref<2x128xf32, #tpu.memory_space<vmem>>, vector<2x128xf32>,
    %c0_i32_8 = arith.constant 0 : i32
    %9 = arith.cmpi eq, %arg2, %c0_i32_8 : i32
    %10 = arith.extui %9 : i1 to i32
    %c0_i32_9 = arith.constant 0 : i32
    %11 = arith.cmpi ne, %10, %c0_i32_9 : i32
    scf.if %11 {
      %c0_10 = arith.constant 0 : index
      %c0_11 = arith.constant 0 : index
      %12 = vector.load %arg7[%c0_10, %c0_11] : memref<2x128xf32, #tpu.memory_space<vmem>>, vector<2x128xf32>
      %c0_12 = arith.constant 0 : index
      %c0_13 = arith.constant 0 : index
      %13 = vector.load %arg5[%c0_12, %c0_13] : memref<1x128xf32, #tpu.memory_space<vmem>>, vector<1x128xf32>
      %14 = vector.broadcast %13 : vector<1x128xf32> to vector<2x128xf32>
      %15 = arith.addf %12, %14 : vector<2x128xf32>
      %c0_14 = arith.constant 0 : index
      %c0_15 = arith.constant 0 : index
      %16 = vector.load %arg6[%c0_14, %c0_15] : memref<2x128xf32, #tpu.memory_space<vmem>>, vector<2x128xf32>
      tpu.vector_store %arg6[%c0_14, %c0_15], %15 {strides = array<i32>} : memref<2x128xf32, #tpu.memory_space<vmem>>, vector<2x128xf32>,
    } else {
    }
    return
  }
  func.func @transform_0(%arg0: i32, %arg1: i32, %arg2: i32) -> (i32, i32) {
    %c0_i32 = arith.constant 0 : i32
    return %arg0, %arg2 : i32, i32
  }
  func.func @transform_1(%arg0: i32, %arg1: i32, %arg2: i32) -> (i32, i32) {
    %c0_i32 = arith.constant 0 : i32
    return %arg2, %arg1 : i32, i32
  }
  func.func @transform_2(%arg0: i32, %arg1: i32, %arg2: i32) -> (i32, i32) {
    %c0_i32 = arith.constant 0 : i32
    %c0_i32_0 = arith.constant 0 : i32
    return %c0_i32, %arg1 : i32, i32
  }
  func.func @transform_3(%arg0: i32, %arg1: i32, %arg2: i32) -> (i32, i32) {
    %c0_i32 = arith.constant 0 : i32
    return %arg0, %arg1 : i32, i32
  }
}

</mosaic_0001>

<llo_original>
// kernel: bert_forward.17
$region0: #{bert_forward.17}
  #allocation0 [shape = 'u32[]', space=smem, size = 0x4, offset = 0x4, fixed_abs, tag = 'smem constant byte address 0x4 - core index']
  #allocation1 [shape = 'u32[144,128]{1,0:T(1,128)}', space=vmem, size = 0x12000, scoped, tag = 'internal scratch']
  #allocation2 [shape = 'f32[16,32]{1,0:T(8,128)}', space=vmem, size = 0x2000, scoped, tag = 'scratch operand']
  %s0 = inlined_call_operand.vmem [shape: bf16[16,32], index: 0, kind: input, shape index: {}]
  %s1 = inlined_call_operand.vmem [shape: bf16[32,32], index: 1, kind: input, shape index: {}]
  %s2 = inlined_call_operand.vmem [shape: f32[1,32], index: 2, kind: input, shape index: {}]
  %s3 = inlined_call_operand.vmem [shape: bf16[16,32], index: 3, kind: output, shape index: {}]
  %s4 = sld [smem:[#allocation0]]
  $region30: #{bert_forward.17} parent=0
    _
  %s6 = ssub.s32 1, %s4
  %s7 = scalar_select 0, %s6, %s4
  // Predicated region
  $region2: #{bert_forward.17} parent=0 // pred_check
    _
  $region3: #{bert_forward.17} parent=0 // pred_check_branch
    %9 = sbr.rel (0) target = $region5
  $region4: #{bert_forward.17} parent=0 // pred_region
    _
  $region5: #{bert_forward.17} parent=0 // pred_fallthru
    _
  // Predicated region
  $region6: #{bert_forward.17} parent=0 // pred_check
    _
  $region7: #{bert_forward.17} parent=0 // pred_check_branch
    %11 = sbr.rel (0) target = $region9
  $region8: #{bert_forward.17} parent=0 // pred_region
    _
  $region9: #{bert_forward.17} parent=0 // pred_fallthru
    _
  // Predicated region
  $region10: #{bert_forward.17} parent=0 // pred_check
    _
  $region11: #{bert_forward.17} parent=0 // pred_check_branch
    %13 = sbr.rel (0) target = $region13
  $region12: #{bert_forward.17} parent=0 // pred_region
    _
  $region13: #{bert_forward.17} parent=0 // pred_fallthru
    _
  %p15 = scmp.eq.s32.totalorder 0, 0
  // Predicated region
  $region14: #{bert_forward.17} parent=0 // pred_check
    %p16 = pneg %p15
  $region15: #{bert_forward.17} parent=0 // pred_check_branch
    %18 = sbr.rel (%p16) target = $region17
  $region16: #{bert_forward.17} parent=0 // pred_region
    %vm19 = vcmask 261120
    %20 = vst.msk [vmem:[#allocation2] sm:$0xff] %vm19, 0.0
    %21 = vst.msk [vmem:[#allocation2 + $0x8] sm:$0xff] %vm19, 0.0
  $region17: #{bert_forward.17} parent=0 // pred_fallthru
    _
  %v22 = vld [vmem:[#allocation2] sm:$0xff]
  %v23 = vld [vmem:[#allocation2 + $0x8] sm:$0xff]
  %v24 = vld [vmem:[%s0] sm:$0xf]
  %v25 = vld [vmem:[%s0 + $0x4] sm:$0xf]
  %v26 = vld [vmem:[%s1] sm:$0xf]
  %v27 = vld [vmem:[%s1 + $0x4] sm:$0xf]
  %v28 = vld [vmem:[%s1 + $0x8] sm:$0xf]
  %v29 = vld [vmem:[%s1 + $0xc] sm:$0xf]
  %v32 = vunpack.c.l.b16 %v24
  %v33 = vunpack.c.l.b16 %v25
  %v34 = vpack.c.b16 %v33, %v32
  %v39 = vunpack.c.l.b16 %v26
  %v40 = vunpack.c.l.b16 %v27
  %v41 = vunpack.c.l.b16 %v28
  %v42 = vunpack.c.l.b16 %v29
  %v43 = vpack.c.b16 %v40, %v39
  %v44 = vpack.c.b16 %v42, %v41
  %vm47 = vcmask 261120
  %v49 = vsel %vm47, %v34, 0
  %51 = vmatprep.subr.bf16.mxu0 0
  %52 = vmatpush1.bf16.msra.mxu0 %v43
  %53 = vmatprep.subr.bf16.mxu0 0
  %54 = vmatpush1.bf16.msra.mxu0 %v44
  %55 = vmatprep.subr.bf16.mxu0 0
  %56 = vmatpush1.bf16.msra.mxu0 0
  %57 = vmatprep.subr.bf16.mxu0 0
  %58 = vmatpush1.bf16.msra.mxu0 0
  %59 = vmatprep.subr.bf16.mxu0 0
  %60 = vmatpush1.bf16.msra.mxu0 0
  %61 = vmatprep.subr.bf16.mxu0 0
  %62 = vmatpush1.bf16.msra.mxu0 0
  %63 = vmatprep.subr.bf16.mxu0 0
  %64 = vmatpush1.bf16.msra.mxu0 0
  %65 = vmatprep.subr.bf16.mxu0 0
  %66 = vmatpush1.bf16.msra.mxu0 0
  %67 = vmatprep.subr.bf16.mxu0 0
  %68 = vmatpush1.bf16.msra.mxu0 0
  %69 = vmatprep.subr.bf16.mxu0 0
  %70 = vmatpush1.bf16.msra.mxu0 0
  %71 = vmatprep.subr.bf16.mxu0 0
  %72 = vmatpush1.bf16.msra.mxu0 0
  %73 = vmatprep.subr.bf16.mxu0 0
  %74 = vmatpush1.bf16.msra.mxu0 0
  %75 = vmatprep.subr.bf16.mxu0 0
  %76 = vmatpush1.bf16.msra.mxu0 0
  %77 = vmatprep.subr.bf16.mxu0 0
  %78 = vmatpush1.bf16.msra.mxu0 0
  %79 = vmatprep.subr.bf16.mxu0 0
  %80 = vmatpush1.bf16.msra.mxu0 0
  %81 = vmatprep.subr.bf16.mxu0 0
  %82 = vmatpush1.bf16.msra.mxu0 0
  %83 = vmatprep.mubr.bf16.mxu0 0
  %84 = vmatmul.mubr.bf16.gmra.mrb[0].mxu0 %v49
  %v85 = vpop.f32.mrb[0].mxu0
  %v86 = vadd.f32 0.0, %v85
  %v87 = vpop.f32.mrb[0].mxu0
  %v88 = vpop.f32.mrb[0].mxu0
  %v89 = vadd.f32 0.0, %v88
  %v90 = vpop.f32.mrb[0].mxu0
  %91 = vdwg.mxu0
  %v92 = vadd.f32 %v22, %v86
  %v93 = vadd.f32 %v23, %v89
  %94 = vst.msk [vmem:[#allocation2] sm:$0xff] %vm47, %v92
  %95 = vst.msk [vmem:[#allocation2 + $0x8] sm:$0xff] %vm47, %v93
  // Predicated region
  $region18: #{bert_forward.17} parent=0 // pred_check
    %p96 = pneg %p15
  $region19: #{bert_forward.17} parent=0 // pred_check_branch
    %98 = sbr.rel (%p96) target = $region21
  $region20: #{bert_forward.17} parent=0 // pred_region
    %v99 = vld [vmem:[#allocation2] sm:$0xff]
    %v100 = vld [vmem:[#allocation2 + $0x8] sm:$0xff]
    %v101 = vld [vmem:[%s2] sm:$0x1]
    %v103 = vlaneseq
    %v104 = vshrl.u32 %v103, 7
    %v105 = vsub.s32 0, %v104
    %v106 = vrot.slane %v101, %v105
    %v108 = vadd.f32 %v99, %v106
    %v109 = vadd.f32 %v100, %v106
    %v110 = vpack.c.bf16 %v109, %v108
    %v112 = vunpack.c.l.b16 %v110
    %v113 = vunpack.c.h.b16 %v110
    %v114 = vpack.c.b16 %v112, %v112
    %v115 = vpack.c.b16 %v113, %v113
    %vm118 = vcmask 257024
    %119 = vst.msk [vmem:[%s3] sm:$0xf] %vm118, %v114
    %120 = vst.msk [vmem:[%s3 + $0x4] sm:$0xf] %vm118, %v115
  $region21: #{bert_forward.17} parent=0 // pred_fallthru
    _
  // Predicated region
  $region22: #{bert_forward.17} parent=0 // pred_check
    _
  $region23: #{bert_forward.17} parent=0 // pred_check_branch
    %122 = sbr.rel (0) target = $region25
  $region24: #{bert_forward.17} parent=0 // pred_region
    _
  $region25: #{bert_forward.17} parent=0 // pred_fallthru
    _
  // Predicated region
  $region26: #{bert_forward.17} parent=0 // pred_check
    _
  $region27: #{bert_forward.17} parent=0 // pred_check_branch
    %124 = sbr.rel (0) target = $region29
  $region28: #{bert_forward.17} parent=0 // pred_region
    _
  $region29: #{bert_forward.17} parent=0 // pred_fallthru
    _

// kernel: bert_forward.14
$region0: #{bert_forward.14}
  #allocation0 [shape = 'u32[]', space=smem, size = 0x4, offset = 0x4, fixed_abs, tag = 'smem constant byte address 0x4 - core index']
  #allocation1 [shape = 'u32[144,128]{1,0:T(1,128)}', space=vmem, size = 0x12000, scoped, tag = 'internal scratch']
  %s0 = inlined_call_operand.vmem [shape: f32[16,32], index: 0, kind: input, shape index: {}]
  %s1 = inlined_call_operand.vmem [shape: f32[1,32], index: 1, kind: input, shape index: {}]
  %s2 = inlined_call_operand.vmem [shape: f32[1,32], index: 2, kind: input, shape index: {}]
  %s3 = inlined_call_operand.vmem [shape: bf16[16,32], index: 3, kind: output, shape index: {}]
  %s4 = sld [smem:[#allocation0]]
  $region22: #{bert_forward.14} parent=0
    _
  %s6 = ssub.s32 1, %s4
  %s7 = scalar_select 0, %s6, %s4
  // Predicated region
  $region2: #{bert_forward.14} parent=0 // pred_check
    _
  $region3: #{bert_forward.14} parent=0 // pred_check_branch
    %9 = sbr.rel (0) target = $region5
  $region4: #{bert_forward.14} parent=0 // pred_region
    _
  $region5: #{bert_forward.14} parent=0 // pred_fallthru
    _
  // Predicated region
  $region6: #{bert_forward.14} parent=0 // pred_check
    _
  $region7: #{bert_forward.14} parent=0 // pred_check_branch
    %11 = sbr.rel (0) target = $region9
  $region8: #{bert_forward.14} parent=0 // pred_region
    _
  $region9: #{bert_forward.14} parent=0 // pred_fallthru
    _
  // Predicated region
  $region10: #{bert_forward.14} parent=0 // pred_check
    _
  $region11: #{bert_forward.14} parent=0 // pred_check_branch
    %13 = sbr.rel (0) target = $region13
  $region12: #{bert_forward.14} parent=0 // pred_region
    _
  $region13: #{bert_forward.14} parent=0 // pred_fallthru
    _
  %v14 = vld [vmem:[%s0] sm:$0xff]
  %v15 = vld [vmem:[%s0 + $0x8] sm:$0xff]
  %vm16 = vcmask 261120
  %v17 = vsel %vm16, %v14, 0.0
  %18 = vadd.xlane.f32.xlu0 %v17
  %v19 = vpop.xlane.xlu0 %18
  %v20 = vsel %vm16, %v15, 0.0
  %21 = vadd.xlane.f32.xlu0 %v20
  %v22 = vpop.xlane.xlu0 %21
  %v23 = vrcp.pop 32.0
  %v24 = vmul.f32 %v19, %v23
  %v25 = vmul.f32 %v22, %v23
  %v26 = vsub.f32 %v14, %v24
  %v27 = vsub.f32 %v15, %v25
  %v28 = vmul.f32 %v26, %v26
  %v29 = vmul.f32 %v27, %v27
  %v30 = vsel %vm16, %v28, 0.0
  %31 = vadd.xlane.f32.xlu0 %v30
  %v32 = vpop.xlane.xlu0 %31
  %v33 = vsel %vm16, %v29, 0.0
  %34 = vadd.xlane.f32.xlu0 %v33
  %v35 = vpop.xlane.xlu0 %34
  %v36 = vmul.f32 %v32, %v23
  %v37 = vmul.f32 %v35, %v23
  %v38 = vadd.f32 %v36, 1e-12
  %v39 = vadd.f32 %v37, 1e-12
  %v40 = vrsqrt.pop %v38
  %v41 = vrsqrt.pop %v39
  %v42 = vmul.f32 %v26, %v40
  %v43 = vmul.f32 %v27, %v41
  %v44 = vld [vmem:[%s1] sm:$0x1]
  %v46 = vlaneseq
  %v47 = vshrl.u32 %v46, 7
  %v48 = vsub.s32 0, %v47
  %v49 = vrot.slane %v44, %v48
  %v51 = vmul.f32 %v42, %v49
  %v52 = vmul.f32 %v43, %v49
  %v53 = vld [vmem:[%s2] sm:$0x1]
  %v55 = vlaneseq
  %v56 = vshrl.u32 %v55, 7
  %v57 = vsub.s32 0, %v56
  %v58 = vrot.slane %v53, %v57
  %v60 = vadd.f32 %v51, %v58
  %v61 = vadd.f32 %v52, %v58
  %v62 = vpack.c.bf16 %v61, %v60
  %v64 = vunpack.c.l.b16 %v62
  %v65 = vunpack.c.h.b16 %v62
  %v66 = vpack.c.b16 %v64, %v64
  %v67 = vpack.c.b16 %v65, %v65
  %vm70 = vcmask 257024
  %71 = vst.msk [vmem:[%s3] sm:$0xf] %vm70, %v66
  %72 = vst.msk [vmem:[%s3 + $0x4] sm:$0xf] %vm70, %v67
  // Predicated region
  $region14: #{bert_forward.14} parent=0 // pred_check
    _
  $region15: #{bert_forward.14} parent=0 // pred_check_branch
    %74 = sbr.rel (0) target = $region17
  $region16: #{bert_forward.14} parent=0 // pred_region
    _
  $region17: #{bert_forward.14} parent=0 // pred_fallthru
    _
  // Predicated region
  $region18: #{bert_forward.14} parent=0 // pred_check
    _
  $region19: #{bert_forward.14} parent=0 // pred_check_branch
    %76 = sbr.rel (0) target = $region21
  $region20: #{bert_forward.14} parent=0 // pred_region
    _
  $region21: #{bert_forward.14} parent=0 // pred_fallthru
    _

// kernel: bert_forward.15
$region0: #{bert_forward.15}
  #allocation0 [shape = 'u32[]', space=smem, size = 0x4, offset = 0x4, fixed_abs, tag = 'smem constant byte address 0x4 - core index']
  #allocation1 [shape = 'u32[144,128]{1,0:T(1,128)}', space=vmem, size = 0x12000, scoped, tag = 'internal scratch']
  #allocation2 [shape = 'f32[16,96]{1,0:T(8,128)}', space=vmem, size = 0x2000, scoped, tag = 'scratch operand']
  %s0 = inlined_call_operand.vmem [shape: bf16[16,32], index: 0, kind: input, shape index: {}]
  %s1 = inlined_call_operand.vmem [shape: bf16[32,96], index: 1, kind: input, shape index: {}]
  %s2 = inlined_call_operand.vmem [shape: f32[1,96], index: 2, kind: input, shape index: {}]
  %s3 = inlined_call_operand.vmem [shape: bf16[16,96], index: 3, kind: output, shape index: {}]
  %s4 = sld [smem:[#allocation0]]
  $region30: #{bert_forward.15} parent=0
    _
  %s6 = ssub.s32 1, %s4
  %s7 = scalar_select 0, %s6, %s4
  // Predicated region
  $region2: #{bert_forward.15} parent=0 // pred_check
    _
  $region3: #{bert_forward.15} parent=0 // pred_check_branch
    %9 = sbr.rel (0) target = $region5
  $region4: #{bert_forward.15} parent=0 // pred_region
    _
  $region5: #{bert_forward.15} parent=0 // pred_fallthru
    _
  // Predicated region
  $region6: #{bert_forward.15} parent=0 // pred_check
    _
  $region7: #{bert_forward.15} parent=0 // pred_check_branch
    %11 = sbr.rel (0) target = $region9
  $region8: #{bert_forward.15} parent=0 // pred_region
    _
  $region9: #{bert_forward.15} parent=0 // pred_fallthru
    _
  // Predicated region
  $region10: #{bert_forward.15} parent=0 // pred_check
    _
  $region11: #{bert_forward.15} parent=0 // pred_check_branch
    %13 = sbr.rel (0) target = $region13
  $region12: #{bert_forward.15} parent=0 // pred_region
    _
  $region13: #{bert_forward.15} parent=0 // pred_fallthru
    _
  %p15 = scmp.eq.s32.totalorder 0, 0
  // Predicated region
  $region14: #{bert_forward.15} parent=0 // pred_check
    %p16 = pneg %p15
  $region15: #{bert_forward.15} parent=0 // pred_check_branch
    %18 = sbr.rel (%p16) target = $region17
  $region16: #{bert_forward.15} parent=0 // pred_region
    %vm19 = vcmask 785408
    %20 = vst.msk [vmem:[#allocation2] sm:$0xff] %vm19, 0.0
    %21 = vst.msk [vmem:[#allocation2 + $0x8] sm:$0xff] %vm19, 0.0
  $region17: #{bert_forward.15} parent=0 // pred_fallthru
    _
  %v22 = vld [vmem:[#allocation2] sm:$0xff]
  %v23 = vld [vmem:[#allocation2 + $0x8] sm:$0xff]
  %v24 = vld [vmem:[%s0] sm:$0xf]
  %v25 = vld [vmem:[%s0 + $0x4] sm:$0xf]
  %v26 = vld [vmem:[%s1] sm:$0xf]
  %v27 = vld [vmem:[%s1 + $0x4] sm:$0xf]
  %v28 = vld [vmem:[%s1 + $0x8] sm:$0xf]
  %v29 = vld [vmem:[%s1 + $0xc] sm:$0xf]
  %v32 = vunpack.c.l.b16 %v24
  %v33 = vunpack.c.l.b16 %v25
  %v34 = vpack.c.b16 %v33, %v32
  %v39 = vunpack.c.l.b16 %v26
  %v40 = vunpack.c.l.b16 %v27
  %v41 = vunpack.c.l.b16 %v28
  %v42 = vunpack.c.l.b16 %v29
  %v43 = vpack.c.b16 %v40, %v39
  %v44 = vpack.c.b16 %v42, %v41
  %vm47 = vcmask 261120
  %v49 = vsel %vm47, %v34, 0
  %51 = vmatprep.subr.bf16.mxu0 0
  %52 = vmatpush1.bf16.msra.mxu0 %v43
  %53 = vmatprep.subr.bf16.mxu0 0
  %54 = vmatpush1.bf16.msra.mxu0 %v44
  %55 = vmatprep.subr.bf16.mxu0 0
  %56 = vmatpush1.bf16.msra.mxu0 0
  %57 = vmatprep.subr.bf16.mxu0 0
  %58 = vmatpush1.bf16.msra.mxu0 0
  %59 = vmatprep.subr.bf16.mxu0 0
  %60 = vmatpush1.bf16.msra.mxu0 0
  %61 = vmatprep.subr.bf16.mxu0 0
  %62 = vmatpush1.bf16.msra.mxu0 0
  %63 = vmatprep.subr.bf16.mxu0 0
  %64 = vmatpush1.bf16.msra.mxu0 0
  %65 = vmatprep.subr.bf16.mxu0 0
  %66 = vmatpush1.bf16.msra.mxu0 0
  %67 = vmatprep.subr.bf16.mxu0 0
  %68 = vmatpush1.bf16.msra.mxu0 0
  %69 = vmatprep.subr.bf16.mxu0 0
  %70 = vmatpush1.bf16.msra.mxu0 0
  %71 = vmatprep.subr.bf16.mxu0 0
  %72 = vmatpush1.bf16.msra.mxu0 0
  %73 = vmatprep.subr.bf16.mxu0 0
  %74 = vmatpush1.bf16.msra.mxu0 0
  %75 = vmatprep.subr.bf16.mxu0 0
  %76 = vmatpush1.bf16.msra.mxu0 0
  %77 = vmatprep.subr.bf16.mxu0 0
  %78 = vmatpush1.bf16.msra.mxu0 0
  %79 = vmatprep.subr.bf16.mxu0 0
  %80 = vmatpush1.bf16.msra.mxu0 0
  %81 = vmatprep.subr.bf16.mxu0 0
  %82 = vmatpush1.bf16.msra.mxu0 0
  %83 = vmatprep.mubr.bf16.mxu0 0
  %84 = vmatmul.mubr.bf16.gmra.mrb[0].mxu0 %v49
  %v85 = vpop.f32.mrb[0].mxu0
  %v86 = vadd.f32 0.0, %v85
  %v87 = vpop.f32.mrb[0].mxu0
  %v88 = vpop.f32.mrb[0].mxu0
  %v89 = vadd.f32 0.0, %v88
  %v90 = vpop.f32.mrb[0].mxu0
  %91 = vdwg.mxu0
  %v92 = vadd.f32 %v22, %v86
  %v93 = vadd.f32 %v23, %v89
  %vm94 = vcmask 785408
  %95 = vst.msk [vmem:[#allocation2] sm:$0xff] %vm94, %v92
  %96 = vst.msk [vmem:[#allocation2 + $0x8] sm:$0xff] %vm94, %v93
  // Predicated region
  $region18: #{bert_forward.15} parent=0 // pred_check
    %p97 = pneg %p15
  $region19: #{bert_forward.15} parent=0 // pred_check_branch
    %99 = sbr.rel (%p97) target = $region21
  $region20: #{bert_forward.15} parent=0 // pred_region
    %v100 = vld [vmem:[#allocation2] sm:$0xff]
    %v101 = vld [vmem:[#allocation2 + $0x8] sm:$0xff]
    %v102 = vld [vmem:[%s2] sm:$0x1]
    %v104 = vlaneseq
    %v105 = vshrl.u32 %v104, 7
    %v106 = vsub.s32 0, %v105
    %v107 = vrot.slane %v102, %v106
    %v109 = vadd.f32 %v100, %v107
    %v110 = vadd.f32 %v101, %v107
    %v111 = vpack.c.bf16 %v110, %v109
    %v113 = vunpack.c.l.b16 %v111
    %v114 = vunpack.c.h.b16 %v111
    %v115 = vpack.c.b16 %v113, %v113
    %v116 = vpack.c.b16 %v114, %v114
    %vm119 = vcmask 781312
    %120 = vst.msk [vmem:[%s3] sm:$0xf] %vm119, %v115
    %121 = vst.msk [vmem:[%s3 + $0x4] sm:$0xf] %vm119, %v116
  $region21: #{bert_forward.15} parent=0 // pred_fallthru
    _
  // Predicated region
  $region22: #{bert_forward.15} parent=0 // pred_check
    _
  $region23: #{bert_forward.15} parent=0 // pred_check_branch
    %123 = sbr.rel (0) target = $region25
  $region24: #{bert_forward.15} parent=0 // pred_region
    _
  $region25: #{bert_forward.15} parent=0 // pred_fallthru
    _
  // Predicated region
  $region26: #{bert_forward.15} parent=0 // pred_check
    _
  $region27: #{bert_forward.15} parent=0 // pred_check_branch
    %125 = sbr.rel (0) target = $region29
  $region28: #{bert_forward.15} parent=0 // pred_region
    _
  $region29: #{bert_forward.15} parent=0 // pred_fallthru
    _

// kernel: bert_forward.16
$region0: #{bert_forward.16}
  #allocation0 [shape = 'u32[]', space=smem, size = 0x4, offset = 0x4, fixed_abs, tag = 'smem constant byte address 0x4 - core index']
  #allocation1 [shape = 'u32[144,128]{1,0:T(1,128)}', space=vmem, size = 0x12000, scoped, tag = 'internal scratch']
  %s0 = inlined_call_operand.vmem [shape: bf16[2,8,96], index: 0, kind: input, shape index: {}]
  %s1 = inlined_call_operand.vmem [shape: f32[2,1,8], index: 1, kind: input, shape index: {}]
  %s2 = inlined_call_operand.vmem [shape: bf16[2,8,32], index: 2, kind: output, shape index: {}]
  %s3 = sld [smem:[#allocation0]]
  $region41: #{bert_forward.16} parent=0
    _
  %s5 = ssub.s32 1, %s3
  %s6 = scalar_select 0, %s5, %s3
  loop: start=0, step=1, limit=4
  $region2: #{bert_forward.16} parent=0 // loop_pre_header
    _
  $region3: #{bert_forward.16} parent=0 // loop_header
    %s8 = sphi 0, %s12
    %p9 = scmp.ge.s32.totalorder %s8, 4
    %s18 = sphi 0, %s20
    %s21 = sphi 0, %s18
    %s22 = sphi 0, %s21
    %s38 = sphi 0, %s22
    %s44 = sphi 0, %s46
    %s47 = sphi 0, %s44
    %s48 = sphi 0, %s47
    %s64 = sphi 0, %s48
    %s70 = sphi 0, %s72
    %s73 = sphi 0, %s70
    %s74 = sphi 0, %s73
    %s90 = sphi 0, %s74
  $region4: #{bert_forward.16} parent=0 // loop_header_branch
    %11 = sbr.rel (%p9) target = $region8
  $region5: #{bert_forward.16} parent=0 // loop_body
    %s13 = ssub.s32 %s8, 1
    %s14 = ssub.s32 %s8, 2
    %s15 = sadd.s32 %s8, 1
    %s16 = ssub.s32 %s8, %s15
    %p17 = scmp.eq.s32.totalorder %s16, 0
    %s19 = sadd.s32 %s18, 1
    %s20 = scalar_select %p17, %s18, %s19
    %p23 = pneg %p17
    %p24 = scmp.eq.s32.totalorder %s8, 1
    %p25 = por %p23, %p24
    %p26 = scmp.ne.s32.totalorder %s18, %s21
    %p27 = scmp.eq.s32.totalorder %s8, 0
    %p28 = por %p26, %p27
    %p29 = scmp.ne.s32.totalorder %s18, %s21
    %p30 = scmp.eq.s32.totalorder %s13, 1
    %p31 = por %p29, %p30
    %p32 = scmp.ne.s32.totalorder %s21, %s22
    %p33 = scmp.eq.s32.totalorder %s13, 0
    %p34 = por %p32, %p33
    %p35 = scmp.ne.s32.totalorder %s21, %s22
    %p36 = scmp.eq.s32.totalorder %s14, 1
    %p37 = por %p35, %p36
    %p39 = scmp.ne.s32.totalorder %s22, %s38
    %p40 = scmp.eq.s32.totalorder %s14, 0
    %p41 = por %p39, %p40
    %s42 = ssub.s32 %s8, %s15
    %p43 = scmp.eq.s32.totalorder %s42, 0
    %s45 = sadd.s32 %s44, 1
    %s46 = scalar_select %p43, %s44, %s45
    %p49 = pneg %p43
    %p50 = scmp.eq.s32.totalorder %s8, 1
    %p51 = por %p49, %p50
    %p52 = scmp.ne.s32.totalorder %s44, %s47
    %p53 = scmp.eq.s32.totalorder %s8, 0
    %p54 = por %p52, %p53
    %p55 = scmp.ne.s32.totalorder %s44, %s47
    %p56 = scmp.eq.s32.totalorder %s13, 1
    %p57 = por %p55, %p56
    %p58 = scmp.ne.s32.totalorder %s47, %s48
    %p59 = scmp.eq.s32.totalorder %s13, 0
    %p60 = por %p58, %p59
    %p61 = scmp.ne.s32.totalorder %s47, %s48
    %p62 = scmp.eq.s32.totalorder %s14, 1
    %p63 = por %p61, %p62
    %p65 = scmp.ne.s32.totalorder %s48, %s64
    %p66 = scmp.eq.s32.totalorder %s14, 0
    %p67 = por %p65, %p66
    %s68 = ssub.s32 %s8, %s15
    %p69 = scmp.eq.s32.totalorder %s68, 0
    %s71 = sadd.s32 %s70, 1
    %s72 = scalar_select %p69, %s70, %s71
    %p75 = pneg %p69
    %p76 = scmp.eq.s32.totalorder %s8, 1
    %p77 = por %p75, %p76
    %p78 = scmp.ne.s32.totalorder %s70, %s73
    %p79 = scmp.eq.s32.totalorder %s8, 0
    %p80 = por %p78, %p79
    %p81 = scmp.ne.s32.totalorder %s70, %s73
    %p82 = scmp.eq.s32.totalorder %s13, 1
    %p83 = por %p81, %p82
    %p84 = scmp.ne.s32.totalorder %s73, %s74
    %p85 = scmp.eq.s32.totalorder %s13, 0
    %p86 = por %p84, %p85
    %p87 = scmp.ne.s32.totalorder %s73, %s74
    %p88 = scmp.eq.s32.totalorder %s14, 1
    %p89 = por %p87, %p88
    %p91 = scmp.ne.s32.totalorder %s74, %s90
    %p92 = scmp.eq.s32.totalorder %s14, 0
    %p93 = por %p91, %p92
    %p94 = scmp.le.s32.totalorder 1, %s8
    %p95 = scmp.lt.s32.totalorder %s8, 3
    %p96 = pnand %p94, %p95
    %p97 = pneg %p96
    // Predicated region
    $region9: #{bert_forward.16} parent=5 // pred_check
      _
    $region10: #{bert_forward.16} parent=5 // pred_check_branch
      %99 = sbr.rel (%p96) target = $region12
    $region11: #{bert_forward.16} parent=5 // pred_region
      %s100 = ssub.s32 %s8, 1
    $region12: #{bert_forward.16} parent=5 // pred_fallthru
      _
    %p101 = scmp.lt.s32.totalorder %s8, 2
    // Predicated region
    $region13: #{bert_forward.16} parent=5 // pred_check
      %p102 = pneg %p101
    $region14: #{bert_forward.16} parent=5 // pred_check_branch
      %104 = sbr.rel (%p102) target = $region16
    $region15: #{bert_forward.16} parent=5 // pred_region
      // Predicated region
      $region17: #{bert_forward.16} parent=15 // pred_check
        %p105 = pneg %p28
      $region18: #{bert_forward.16} parent=15 // pred_check_branch
        %107 = sbr.rel (%p105) target = $region20
      $region19: #{bert_forward.16} parent=15 // pred_region
        %p108 = scmp.lt.s32.totalorder %s8, 1
        %s109 = scalar_select %p108, %s8, 1
        %s110 = smul.addr %s109, 4
        %s111 = scalar_lea.vmem %s0, %s110
      $region20: #{bert_forward.16} parent=15 // pred_fallthru
        _
      // Predicated region
      $region21: #{bert_forward.16} parent=15 // pred_check
        %p112 = pneg %p54
      $region22: #{bert_forward.16} parent=15 // pred_check_branch
        %114 = sbr.rel (%p112) target = $region24
      $region23: #{bert_forward.16} parent=15 // pred_region
        %p115 = scmp.lt.s32.totalorder %s8, 1
        %s116 = scalar_select %p115, %s8, 1
        %s117 = scalar_lea.vmem %s1, %s116
      $region24: #{bert_forward.16} parent=15 // pred_fallthru
        _
    $region16: #{bert_forward.16} parent=5 // pred_fallthru
      _
    %p118 = scmp.le.s32.totalorder 1, %s8
    %p119 = scmp.lt.s32.totalorder %s8, 3
    %p120 = pnand %p118, %p119
    %p121 = pneg %p120
    // Predicated region
    $region25: #{bert_forward.16} parent=5 // pred_check
      _
    $region26: #{bert_forward.16} parent=5 // pred_check_branch
      %123 = sbr.rel (%p120) target = $region28
    $region27: #{bert_forward.16} parent=5 // pred_region
      %s124 = ssub.s32 %s8, 1
      %p125 = scmp.lt.s32.totalorder %s13, 1
      %s126 = scalar_select %p125, %s13, 1
      %s127 = smul.addr %s126, 4
      %s128 = scalar_lea.vmem %s0, %s127
      %p129 = pneg %p34
      %p130 = pneg %p31
      %p131 = scmp.lt.s32.totalorder %s13, 1
      %s132 = scalar_select %p131, %s13, 1
      %s133 = scalar_lea.vmem %s1, %s132
      %p134 = pneg %p60
      %p135 = pneg %p57
      %p136 = pneg %p86
      %p137 = pneg %p83
      %p138 = scmp.lt.s32.totalorder %s13, 1
      %s139 = scalar_select %p138, %s13, 1
      %s140 = smul.addr %s139, 4
      %s141 = scalar_lea.vmem %s2, %s140
      %p142 = scmp.lt.s32.totalorder %s13, 1
      %s143 = scalar_select %p142, %s13, 1
      %s144 = smul.addr %s143, 4
      %s145 = scalar_lea.vmem %s0, %s144
      %p146 = scmp.lt.s32.totalorder %s13, 1
      %s147 = scalar_select %p146, %s13, 1
      %s148 = scalar_lea.vmem %s1, %s147
      %p149 = scmp.lt.s32.totalorder %s13, 1
      %s150 = scalar_select %p149, %s13, 1
      %s151 = smul.addr %s150, 4
      %s152 = scalar_lea.vmem %s2, %s151
      %v154 = vld [vmem:[%s148] sm:$0x1]
      %v155 = vld [vmem:[%s145] sm:$0xf]
      %v157 = vlaneseq
      %v158 = vshrl.u32 %v157, 7
      %v159 = vsub.s32 0, %v158
      %v160 = vrot.slane %v154, %v159
      %v163 = vunpack.c.l.b16 %v155
      %v164 = vpack.c.b16 %v163, %v163
      %165 = vrot.lane.b32.xlu0 %v164, 96
      %v166 = vpop.permute.xlu0 %165
      %vm167 = vcmask 64512
      %v169 = vsel %vm167, %v155, 0
      %v172 = vsel %vm167, %v166, 0
      %174 = vmatprep.subr.bf16.mxu0 0
      %175 = vmatpush1.bf16.xpose.msra.mxu0 %v172
      %176 = vmatprep.subr.bf16.mxu0 0
      %177 = vmatpush1.bf16.xpose.msra.mxu0 0
      %178 = vmatprep.subr.bf16.mxu0 0
      %179 = vmatpush1.bf16.xpose.msra.mxu0 0
      %180 = vmatprep.subr.bf16.mxu0 0
      %181 = vmatpush1.bf16.xpose.msra.mxu0 0
      %182 = vmatprep.subr.bf16.mxu0 0
      %183 = vmatpush1.bf16.xpose.msra.mxu0 0
      %184 = vmatprep.subr.bf16.mxu0 0
      %185 = vmatpush1.bf16.xpose.msra.mxu0 0
      %186 = vmatprep.subr.bf16.mxu0 0
      %187 = vmatpush1.bf16.xpose.msra.mxu0 0
      %188 = vmatprep.subr.bf16.mxu0 0
      %189 = vmatpush1.bf16.xpose.msra.mxu0 0
      %190 = vmatprep.subr.bf16.mxu0 0
      %191 = vmatpush1.bf16.xpose.msra.mxu0 0
      %192 = vmatprep.subr.bf16.mxu0 0
      %193 = vmatpush1.bf16.xpose.msra.mxu0 0
      %194 = vmatprep.subr.bf16.mxu0 0
      %195 = vmatpush1.bf16.xpose.msra.mxu0 0
      %196 = vmatprep.subr.bf16.mxu0 0
      %197 = vmatpush1.bf16.xpose.msra.mxu0 0
      %198 = vmatprep.subr.bf16.mxu0 0
      %199 = vmatpush1.bf16.xpose.msra.mxu0 0
      %200 = vmatprep.subr.bf16.mxu0 0
      %201 = vmatpush1.bf16.xpose.msra.mxu0 0
      %202 = vmatprep.subr.bf16.mxu0 0
      %203 = vmatpush1.bf16.xpose.msra.mxu0 0
      %204 = vmatprep.subr.bf16.mxu0 0
      %205 = vmatpush1.bf16.xpose.msra.mxu0 0
      %206 = vmatprep.mubr.bf16.mxu0 0
      %207 = vmatmul.mubr.bf16.gmra.mrb[0].mxu0 %v169
      %v208 = vpop.f32.mrb[0].mxu0
      %v209 = vadd.f32 %v160, %v208
      %v210 = vpop.f32.mrb[0].mxu0
      %v211 = vpop.f32.mrb[0].mxu0
      %v212 = vpop.f32.mrb[0].mxu0
      %213 = vdwg.mxu0
      %v214 = vsel %vm167, %v209, -inf
      %215 = vmax.xlane.f32.xlu0 %v214
      %v216 = vpop.xlane.xlu0 %215
      %v217 = vsub.f32 %v209, %v216
      %v218 = vmul.f32 %v217, 1.442695
      %v219 = vpow.pop %v218
      %v220 = vsel %vm167, %v219, 0.0
      %221 = vadd.xlane.f32.xlu0 %v220
      %v222 = vpop.xlane.xlu0 %221
      %v223 = vrcp.pop %v222
      %v224 = vmul.f32 %v219, %v223
      %v225 = vpack.c.bf16 %v224, %v224
      %226 = vrot.lane.b32.xlu0 %v164, 64
      %v227 = vpop.permute.xlu0 %226
      %v229 = vsel %vm167, %v225, 0
      %vm231 = vcmask 1043456
      %v233 = vsel %vm231, %v227, 0
      %235 = vmatprep.subr.bf16.mxu0 0
      %236 = vmatpush1.bf16.msra.mxu0 %v233
      %237 = vmatprep.subr.bf16.mxu0 0
      %238 = vmatpush1.bf16.msra.mxu0 0
      %239 = vmatprep.subr.bf16.mxu0 0
      %240 = vmatpush1.bf16.msra.mxu0 0
      %241 = vmatprep.subr.bf16.mxu0 0
      %242 = vmatpush1.bf16.msra.mxu0 0
      %243 = vmatprep.subr.bf16.mxu0 0
      %244 = vmatpush1.bf16.msra.mxu0 0
      %245 = vmatprep.subr.bf16.mxu0 0
      %246 = vmatpush1.bf16.msra.mxu0 0
      %247 = vmatprep.subr.bf16.mxu0 0
      %248 = vmatpush1.bf16.msra.mxu0 0
      %249 = vmatprep.subr.bf16.mxu0 0
      %250 = vmatpush1.bf16.msra.mxu0 0
      %251 = vmatprep.subr.bf16.mxu0 0
      %252 = vmatpush1.bf16.msra.mxu0 0
      %253 = vmatprep.subr.bf16.mxu0 0
      %254 = vmatpush1.bf16.msra.mxu0 0
      %255 = vmatprep.subr.bf16.mxu0 0
      %256 = vmatpush1.bf16.msra.mxu0 0
      %257 = vmatprep.subr.bf16.mxu0 0
      %258 = vmatpush1.bf16.msra.mxu0 0
      %259 = vmatprep.subr.bf16.mxu0 0
      %260 = vmatpush1.bf16.msra.mxu0 0
      %261 = vmatprep.subr.bf16.mxu0 0
      %262 = vmatpush1.bf16.msra.mxu0 0
      %263 = vmatprep.subr.bf16.mxu0 0
      %264 = vmatpush1.bf16.msra.mxu0 0
      %265 = vmatprep.subr.bf16.mxu0 0
      %266 = vmatpush1.bf16.msra.mxu0 0
      %267 = vmatprep.mubr.bf16.mxu0 0
      %268 = vmatmul.mubr.bf16.gmra.mrb[0].mxu0 %v229
      %v269 = vpop.f32.mrb[0].mxu0
      %v270 = vadd.f32 0.0, %v269
      %v271 = vpop.f32.mrb[0].mxu0
      %v272 = vpop.f32.mrb[0].mxu0
      %v273 = vpop.f32.mrb[0].mxu0
      %274 = vdwg.mxu0
      %275 = vrot.lane.b32.xlu0 %v164, 120
      %v276 = vpop.permute.xlu0 %275
      %277 = vrot.lane.b32.xlu0 %v164, 88
      %v278 = vpop.permute.xlu0 %277
      %v280 = vsel %vm167, %v276, 0
      %v283 = vsel %vm167, %v278, 0
      %285 = vmatprep.subr.bf16.mxu0 0
      %286 = vmatpush1.bf16.xpose.msra.mxu0 %v283
      %287 = vmatprep.subr.bf16.mxu0 0
      %288 = vmatpush1.bf16.xpose.msra.mxu0 0
      %289 = vmatprep.subr.bf16.mxu0 0
      %290 = vmatpush1.bf16.xpose.msra.mxu0 0
      %291 = vmatprep.subr.bf16.mxu0 0
      %292 = vmatpush1.bf16.xpose.msra.mxu0 0
      %293 = vmatprep.subr.bf16.mxu0 0
      %294 = vmatpush1.bf16.xpose.msra.mxu0 0
      %295 = vmatprep.subr.bf16.mxu0 0
      %296 = vmatpush1.bf16.xpose.msra.mxu0 0
      %297 = vmatprep.subr.bf16.mxu0 0
      %298 = vmatpush1.bf16.xpose.msra.mxu0 0
      %299 = vmatprep.subr.bf16.mxu0 0
      %300 = vmatpush1.bf16.xpose.msra.mxu0 0
      %301 = vmatprep.subr.bf16.mxu0 0
      %302 = vmatpush1.bf16.xpose.msra.mxu0 0
      %303 = vmatprep.subr.bf16.mxu0 0
      %304 = vmatpush1.bf16.xpose.msra.mxu0 0
      %305 = vmatprep.subr.bf16.mxu0 0
      %306 = vmatpush1.bf16.xpose.msra.mxu0 0
      %307 = vmatprep.subr.bf16.mxu0 0
      %308 = vmatpush1.bf16.xpose.msra.mxu0 0
      %309 = vmatprep.subr.bf16.mxu0 0
      %310 = vmatpush1.bf16.xpose.msra.mxu0 0
      %311 = vmatprep.subr.bf16.mxu0 0
      %312 = vmatpush1.bf16.xpose.msra.mxu0 0
      %313 = vmatprep.subr.bf16.mxu0 0
      %314 = vmatpush1.bf16.xpose.msra.mxu0 0
      %315 = vmatprep.subr.bf16.mxu0 0
      %316 = vmatpush1.bf16.xpose.msra.mxu0 0
      %317 = vmatprep.mubr.bf16.mxu0 0
      %318 = vmatmul.mubr.bf16.gmra.mrb[0].mxu0 %v280
      %v319 = vpop.f32.mrb[0].mxu0
      %v320 = vadd.f32 %v160, %v319
      %v321 = vpop.f32.mrb[0].mxu0
      %v322 = vpop.f32.mrb[0].mxu0
      %v323 = vpop.f32.mrb[0].mxu0
      %324 = vdwg.mxu0
      %v325 = vsel %vm167, %v320, -inf
      %326 = vmax.xlane.f32.xlu0 %v325
      %v327 = vpop.xlane.xlu0 %326
      %v328 = vsub.f32 %v320, %v327
      %v329 = vmul.f32 %v328, 1.442695
      %v330 = vpow.pop %v329
      %v331 = vsel %vm167, %v330, 0.0
      %332 = vadd.xlane.f32.xlu0 %v331
      %v333 = vpop.xlane.xlu0 %332
      %v334 = vrcp.pop %v333
      %v335 = vmul.f32 %v330, %v334
      %v336 = vpack.c.bf16 %v335, %v335
      %337 = vrot.lane.b32.xlu0 %v164, 56
      %v338 = vpop.permute.xlu0 %337
      %v340 = vsel %vm167, %v336, 0
      %v343 = vsel %vm231, %v338, 0
      %345 = vmatprep.subr.bf16.mxu0 0
      %346 = vmatpush1.bf16.msra.mxu0 %v343
      %347 = vmatprep.subr.bf16.mxu0 0
      %348 = vmatpush1.bf16.msra.mxu0 0
      %349 = vmatprep.subr.bf16.mxu0 0
      %350 = vmatpush1.bf16.msra.mxu0 0
      %351 = vmatprep.subr.bf16.mxu0 0
      %352 = vmatpush1.bf16.msra.mxu0 0
      %353 = vmatprep.subr.bf16.mxu0 0
      %354 = vmatpush1.bf16.msra.mxu0 0
      %355 = vmatprep.subr.bf16.mxu0 0
      %356 = vmatpush1.bf16.msra.mxu0 0
      %357 = vmatprep.subr.bf16.mxu0 0
      %358 = vmatpush1.bf16.msra.mxu0 0
      %359 = vmatprep.subr.bf16.mxu0 0
      %360 = vmatpush1.bf16.msra.mxu0 0
      %361 = vmatprep.subr.bf16.mxu0 0
      %362 = vmatpush1.bf16.msra.mxu0 0
      %363 = vmatprep.subr.bf16.mxu0 0
      %364 = vmatpush1.bf16.msra.mxu0 0
      %365 = vmatprep.subr.bf16.mxu0 0
      %366 = vmatpush1.bf16.msra.mxu0 0
      %367 = vmatprep.subr.bf16.mxu0 0
      %368 = vmatpush1.bf16.msra.mxu0 0
      %369 = vmatprep.subr.bf16.mxu0 0
      %370 = vmatpush1.bf16.msra.mxu0 0
      %371 = vmatprep.subr.bf16.mxu0 0
      %372 = vmatpush1.bf16.msra.mxu0 0
      %373 = vmatprep.subr.bf16.mxu0 0
      %374 = vmatpush1.bf16.msra.mxu0 0
      %375 = vmatprep.subr.bf16.mxu0 0
      %376 = vmatpush1.bf16.msra.mxu0 0
      %377 = vmatprep.mubr.bf16.mxu0 0
      %378 = vmatmul.mubr.bf16.gmra.mrb[0].mxu0 %v340
      %v379 = vpop.f32.mrb[0].mxu0
      %v380 = vadd.f32 0.0, %v379
      %v381 = vpop.f32.mrb[0].mxu0
      %v382 = vpop.f32.mrb[0].mxu0
      %v383 = vpop.f32.mrb[0].mxu0
      %384 = vdwg.mxu0
      %385 = vrot.lane.b32.xlu0 %v164, 112
      %v386 = vpop.permute.xlu0 %385
      %387 = vrot.lane.b32.xlu0 %v164, 80
      %v388 = vpop.permute.xlu0 %387
      %v390 = vsel %vm167, %v386, 0
      %v393 = vsel %vm167, %v388, 0
      %395 = vmatprep.subr.bf16.mxu0 0
      %396 = vmatpush1.bf16.xpose.msra.mxu0 %v393
      %397 = vmatprep.subr.bf16.mxu0 0
      %398 = vmatpush1.bf16.xpose.msra.mxu0 0
      %399 = vmatprep.subr.bf16.mxu0 0
      %400 = vmatpush1.bf16.xpose.msra.mxu0 0
      %401 = vmatprep.subr.bf16.mxu0 0
      %402 = vmatpush1.bf16.xpose.msra.mxu0 0
      %403 = vmatprep.subr.bf16.mxu0 0
      %404 = vmatpush1.bf16.xpose.msra.mxu0 0
      %405 = vmatprep.subr.bf16.mxu0 0
      %406 = vmatpush1.bf16.xpose.msra.mxu0 0
      %407 = vmatprep.subr.bf16.mxu0 0
      %408 = vmatpush1.bf16.xpose.msra.mxu0 0
      %409 = vmatprep.subr.bf16.mxu0 0
      %410 = vmatpush1.bf16.xpose.msra.mxu0 0
      %411 = vmatprep.subr.bf16.mxu0 0
      %412 = vmatpush1.bf16.xpose.msra.mxu0 0
      %413 = vmatprep.subr.bf16.mxu0 0
      %414 = vmatpush1.bf16.xpose.msra.mxu0 0
      %415 = vmatprep.subr.bf16.mxu0 0
      %416 = vmatpush1.bf16.xpose.msra.mxu0 0
      %417 = vmatprep.subr.bf16.mxu0 0
      %418 = vmatpush1.bf16.xpose.msra.mxu0 0
      %419 = vmatprep.subr.bf16.mxu0 0
      %420 = vmatpush1.bf16.xpose.msra.mxu0 0
      %421 = vmatprep.subr.bf16.mxu0 0
      %422 = vmatpush1.bf16.xpose.msra.mxu0 0
      %423 = vmatprep.subr.bf16.mxu0 0
      %424 = vmatpush1.bf16.xpose.msra.mxu0 0
      %425 = vmatprep.subr.bf16.mxu0 0
      %426 = vmatpush1.bf16.xpose.msra.mxu0 0
      %427 = vmatprep.mubr.bf16.mxu0 0
      %428 = vmatmul.mubr.bf16.gmra.mrb[0].mxu0 %v390
      %v429 = vpop.f32.mrb[0].mxu0
      %v430 = vadd.f32 %v160, %v429
      %v431 = vpop.f32.mrb[0].mxu0
      %v432 = vpop.f32.mrb[0].mxu0
      %v433 = vpop.f32.mrb[0].mxu0
      %434 = vdwg.mxu0
      %v435 = vsel %vm167, %v430, -inf
      %436 = vmax.xlane.f32.xlu0 %v435
      %v437 = vpop.xlane.xlu0 %436
      %v438 = vsub.f32 %v430, %v437
      %v439 = vmul.f32 %v438, 1.442695
      %v440 = vpow.pop %v439
      %v441 = vsel %vm167, %v440, 0.0
      %442 = vadd.xlane.f32.xlu0 %v441
      %v443 = vpop.xlane.xlu0 %442
      %v444 = vrcp.pop %v443
      %v445 = vmul.f32 %v440, %v444
      %v446 = vpack.c.bf16 %v445, %v445
      %447 = vrot.lane.b32.xlu0 %v164, 48
      %v448 = vpop.permute.xlu0 %447
      %v450 = vsel %vm167, %v446, 0
      %v453 = vsel %vm231, %v448, 0
      %455 = vmatprep.subr.bf16.mxu0 0
      %456 = vmatpush1.bf16.msra.mxu0 %v453
      %457 = vmatprep.subr.bf16.mxu0 0
      %458 = vmatpush1.bf16.msra.mxu0 0
      %459 = vmatprep.subr.bf16.mxu0 0
      %460 = vmatpush1.bf16.msra.mxu0 0
      %461 = vmatprep.subr.bf16.mxu0 0
      %462 = vmatpush1.bf16.msra.mxu0 0
      %463 = vmatprep.subr.bf16.mxu0 0
      %464 = vmatpush1.bf16.msra.mxu0 0
      %465 = vmatprep.subr.bf16.mxu0 0
      %466 = vmatpush1.bf16.msra.mxu0 0
      %467 = vmatprep.subr.bf16.mxu0 0
      %468 = vmatpush1.bf16.msra.mxu0 0
      %469 = vmatprep.subr.bf16.mxu0 0
      %470 = vmatpush1.bf16.msra.mxu0 0
      %471 = vmatprep.subr.bf16.mxu0 0
      %472 = vmatpush1.bf16.msra.mxu0 0
      %473 = vmatprep.subr.bf16.mxu0 0
      %474 = vmatpush1.bf16.msra.mxu0 0
      %475 = vmatprep.subr.bf16.mxu0 0
      %476 = vmatpush1.bf16.msra.mxu0 0
      %477 = vmatprep.subr.bf16.mxu0 0
      %478 = vmatpush1.bf16.msra.mxu0 0
      %479 = vmatprep.subr.bf16.mxu0 0
      %480 = vmatpush1.bf16.msra.mxu0 0
      %481 = vmatprep.subr.bf16.mxu0 0
      %482 = vmatpush1.bf16.msra.mxu0 0
      %483 = vmatprep.subr.bf16.mxu0 0
      %484 = vmatpush1.bf16.msra.mxu0 0
      %485 = vmatprep.subr.bf16.mxu0 0
      %486 = vmatpush1.bf16.msra.mxu0 0
      %487 = vmatprep.mubr.bf16.mxu0 0
      %488 = vmatmul.mubr.bf16.gmra.mrb[0].mxu0 %v450
      %v489 = vpop.f32.mrb[0].mxu0
      %v490 = vadd.f32 0.0, %v489
      %v491 = vpop.f32.mrb[0].mxu0
      %v492 = vpop.f32.mrb[0].mxu0
      %v493 = vpop.f32.mrb[0].mxu0
      %494 = vdwg.mxu0
      %495 = vrot.lane.b32.xlu0 %v164, 104
      %v496 = vpop.permute.xlu0 %495
      %497 = vrot.lane.b32.xlu0 %v164, 72
      %v498 = vpop.permute.xlu0 %497
      %v500 = vsel %vm167, %v496, 0
      %v503 = vsel %vm167, %v498, 0
      %505 = vmatprep.subr.bf16.mxu0 0
      %506 = vmatpush1.bf16.xpose.msra.mxu0 %v503
      %507 = vmatprep.subr.bf16.mxu0 0
      %508 = vmatpush1.bf16.xpose.msra.mxu0 0
      %509 = vmatprep.subr.bf16.mxu0 0
      %510 = vmatpush1.bf16.xpose.msra.mxu0 0
      %511 = vmatprep.subr.bf16.mxu0 0
      %512 = vmatpush1.bf16.xpose.msra.mxu0 0
      %513 = vmatprep.subr.bf16.mxu0 0
      %514 = vmatpush1.bf16.xpose.msra.mxu0 0
      %515 = vmatprep.subr.bf16.mxu0 0
      %516 = vmatpush1.bf16.xpose.msra.mxu0 0
      %517 = vmatprep.subr.bf16.mxu0 0
      %518 = vmatpush1.bf16.xpose.msra.mxu0 0
      %519 = vmatprep.subr.bf16.mxu0 0
      %520 = vmatpush1.bf16.xpose.msra.mxu0 0
      %521 = vmatprep.subr.bf16.mxu0 0
      %522 = vmatpush1.bf16.xpose.msra.mxu0 0
      %523 = vmatprep.subr.bf16.mxu0 0
      %524 = vmatpush1.bf16.xpose.msra.mxu0 0
      %525 = vmatprep.subr.bf16.mxu0 0
      %526 = vmatpush1.bf16.xpose.msra.mxu0 0
      %527 = vmatprep.subr.bf16.mxu0 0
      %528 = vmatpush1.bf16.xpose.msra.mxu0 0
      %529 = vmatprep.subr.bf16.mxu0 0
      %530 = vmatpush1.bf16.xpose.msra.mxu0 0
      %531 = vmatprep.subr.bf16.mxu0 0
      %532 = vmatpush1.bf16.xpose.msra.mxu0 0
      %533 = vmatprep.subr.bf16.mxu0 0
      %534 = vmatpush1.bf16.xpose.msra.mxu0 0
      %535 = vmatprep.subr.bf16.mxu0 0
      %536 = vmatpush1.bf16.xpose.msra.mxu0 0
      %537 = vmatprep.mubr.bf16.mxu0 0
      %538 = vmatmul.mubr.bf16.gmra.mrb[0].mxu0 %v500
      %v539 = vpop.f32.mrb[0].mxu0
      %v540 = vadd.f32 %v160, %v539
      %v541 = vpop.f32.mrb[0].mxu0
      %v542 = vpop.f32.mrb[0].mxu0
      %v543 = vpop.f32.mrb[0].mxu0
      %544 = vdwg.mxu0
      %v545 = vsel %vm167, %v540, -inf
      %546 = vmax.xlane.f32.xlu0 %v545
      %v547 = vpop.xlane.xlu0 %546
      %v548 = vsub.f32 %v540, %v547
      %v549 = vmul.f32 %v548, 1.442695
      %v550 = vpow.pop %v549
      %v551 = vsel %vm167, %v550, 0.0
      %552 = vadd.xlane.f32.xlu0 %v551
      %v553 = vpop.xlane.xlu0 %552
      %v554 = vrcp.pop %v553
      %v555 = vmul.f32 %v550, %v554
      %v556 = vpack.c.bf16 %v555, %v555
      %557 = vrot.lane.b32.xlu0 %v164, 40
      %v558 = vpop.permute.xlu0 %557
      %v560 = vsel %vm167, %v556, 0
      %v563 = vsel %vm231, %v558, 0
      %565 = vmatprep.subr.bf16.mxu0 0
      %566 = vmatpush1.bf16.msra.mxu0 %v563
      %567 = vmatprep.subr.bf16.mxu0 0
      %568 = vmatpush1.bf16.msra.mxu0 0
      %569 = vmatprep.subr.bf16.mxu0 0
      %570 = vmatpush1.bf16.msra.mxu0 0
      %571 = vmatprep.subr.bf16.mxu0 0
      %572 = vmatpush1.bf16.msra.mxu0 0
      %573 = vmatprep.subr.bf16.mxu0 0
      %574 = vmatpush1.bf16.msra.mxu0 0
      %575 = vmatprep.subr.bf16.mxu0 0
      %576 = vmatpush1.bf16.msra.mxu0 0
      %577 = vmatprep.subr.bf16.mxu0 0
      %578 = vmatpush1.bf16.msra.mxu0 0
      %579 = vmatprep.subr.bf16.mxu0 0
      %580 = vmatpush1.bf16.msra.mxu0 0
      %581 = vmatprep.subr.bf16.mxu0 0
      %582 = vmatpush1.bf16.msra.mxu0 0
      %583 = vmatprep.subr.bf16.mxu0 0
      %584 = vmatpush1.bf16.msra.mxu0 0
      %585 = vmatprep.subr.bf16.mxu0 0
      %586 = vmatpush1.bf16.msra.mxu0 0
      %587 = vmatprep.subr.bf16.mxu0 0
      %588 = vmatpush1.bf16.msra.mxu0 0
      %589 = vmatprep.subr.bf16.mxu0 0
      %590 = vmatpush1.bf16.msra.mxu0 0
      %591 = vmatprep.subr.bf16.mxu0 0
      %592 = vmatpush1.bf16.msra.mxu0 0
      %593 = vmatprep.subr.bf16.mxu0 0
      %594 = vmatpush1.bf16.msra.mxu0 0
      %595 = vmatprep.subr.bf16.mxu0 0
      %596 = vmatpush1.bf16.msra.mxu0 0
      %597 = vmatprep.mubr.bf16.mxu0 0
      %598 = vmatmul.mubr.bf16.gmra.mrb[0].mxu0 %v560
      %v599 = vpop.f32.mrb[0].mxu0
      %v600 = vadd.f32 0.0, %v599
      %v601 = vpop.f32.mrb[0].mxu0
      %v602 = vpop.f32.mrb[0].mxu0
      %v603 = vpop.f32.mrb[0].mxu0
      %604 = vdwg.mxu0
      %606 = vrot.lane.b32.xlu0 %v380, 8
      %v607 = vpop.permute.xlu0 %606
      %610 = vrot.lane.b32.xlu0 %v490, 16
      %v611 = vpop.permute.xlu0 %610
      %614 = vrot.lane.b32.xlu0 %v600, 24
      %v615 = vpop.permute.xlu0 %614
      %v617 = vsel %vm167, %v270, %v607
      %vm618 = vcmask 130048
      %v619 = vsel %vm618, %v617, %v611
      %vm620 = vcmask 195584
      %v621 = vsel %vm620, %v619, %v615
      %v622 = vpack.c.bf16 %v621, %v621
      %vm623 = vcmask 257024
      %624 = vst.msk [vmem:[%s152] sm:$0xf] %vm623, %v622
      %p625 = scmp.lt.s32.totalorder %s13, 1
      %s626 = scalar_select %p625, %s13, 1
      %s627 = smul.addr %s626, 4
      %s628 = scalar_lea.vmem %s2, %s627
      // Predicated region
      $region29: #{bert_forward.16} parent=27 // pred_check
        %p629 = pneg %p83
      $region30: #{bert_forward.16} parent=27 // pred_check_branch
        %631 = sbr.rel (%p629) target = $region32
      $region31: #{bert_forward.16} parent=27 // pred_region
        _
      $region32: #{bert_forward.16} parent=27 // pred_fallthru
        _
    $region28: #{bert_forward.16} parent=5 // pred_fallthru
      _
    %p632 = scmp.le.s32.totalorder 2, %s8
    // Predicated region
    $region33: #{bert_forward.16} parent=5 // pred_check
      %p633 = pneg %p632
    $region34: #{bert_forward.16} parent=5 // pred_check_branch
      %635 = sbr.rel (%p633) target = $region36
    $region35: #{bert_forward.16} parent=5 // pred_region
      %s636 = ssub.s32 %s8, 2
      // Predicated region
      $region37: #{bert_forward.16} parent=35 // pred_check
        %p637 = pneg %p89
      $region38: #{bert_forward.16} parent=35 // pred_check_branch
        %639 = sbr.rel (%p637) target = $region40
      $region39: #{bert_forward.16} parent=35 // pred_region
        %p640 = scmp.lt.s32.totalorder %s14, 1
        %s641 = scalar_select %p640, %s14, 1
        %s642 = smul.addr %s641, 4
        %s643 = scalar_lea.vmem %s2, %s642
      $region40: #{bert_forward.16} parent=35 // pred_fallthru
        _
    $region36: #{bert_forward.16} parent=5 // pred_fallthru
      _
  $region6: #{bert_forward.16} parent=0 // loop_footer
    %s12 = sadd.s32 1, %s8
  $region7: #{bert_forward.16} parent=0 // loop_footer_branch
    %7 = sbr.rel target = $region3
  $region8: #{bert_forward.16} parent=0 // loop_exit
    _

// kernel: bert_forward.18
$region0: #{bert_forward.18}
  #allocation0 [shape = 'u32[]', space=smem, size = 0x4, offset = 0x4, fixed_abs, tag = 'smem constant byte address 0x4 - core index']
  #allocation1 [shape = 'u32[144,128]{1,0:T(1,128)}', space=vmem, size = 0x12000, scoped, tag = 'internal scratch']
  %s0 = inlined_call_operand.vmem [shape: bf16[16,32], index: 0, kind: input, shape index: {}]
  %s1 = inlined_call_operand.vmem [shape: bf16[16,32], index: 1, kind: input, shape index: {}]
  %s2 = inlined_call_operand.vmem [shape: f32[1,32], index: 2, kind: input, shape index: {}]
  %s3 = inlined_call_operand.vmem [shape: f32[1,32], index: 3, kind: input, shape index: {}]
  %s4 = inlined_call_operand.vmem [shape: bf16[16,32], index: 4, kind: output, shape index: {}]
  %s5 = sld [smem:[#allocation0]]
  $region26: #{bert_forward.18} parent=0
    _
  %s7 = ssub.s32 1, %s5
  %s8 = scalar_select 0, %s7, %s5
  // Predicated region
  $region2: #{bert_forward.18} parent=0 // pred_check
    _
  $region3: #{bert_forward.18} parent=0 // pred_check_branch
    %10 = sbr.rel (0) target = $region5
  $region4: #{bert_forward.18} parent=0 // pred_region
    _
  $region5: #{bert_forward.18} parent=0 // pred_fallthru
    _
  // Predicated region
  $region6: #{bert_forward.18} parent=0 // pred_check
    _
  $region7: #{bert_forward.18} parent=0 // pred_check_branch
    %12 = sbr.rel (0) target = $region9
  $region8: #{bert_forward.18} parent=0 // pred_region
    _
  $region9: #{bert_forward.18} parent=0 // pred_fallthru
    _
  // Predicated region
  $region10: #{bert_forward.18} parent=0 // pred_check
    _
  $region11: #{bert_forward.18} parent=0 // pred_check_branch
    %14 = sbr.rel (0) target = $region13
  $region12: #{bert_forward.18} parent=0 // pred_region
    _
  $region13: #{bert_forward.18} parent=0 // pred_fallthru
    _
  // Predicated region
  $region14: #{bert_forward.18} parent=0 // pred_check
    _
  $region15: #{bert_forward.18} parent=0 // pred_check_branch
    %16 = sbr.rel (0) target = $region17
  $region16: #{bert_forward.18} parent=0 // pred_region
    _
  $region17: #{bert_forward.18} parent=0 // pred_fallthru
    _
  %v17 = vld [vmem:[%s0] sm:$0xf]
  %v18 = vld [vmem:[%s0 + $0x4] sm:$0xf]
  %v19 = vunpack.c.l.bf16 %v17
  %v20 = vunpack.c.l.bf16 %v18
  %v21 = vld [vmem:[%s1] sm:$0xf]
  %v22 = vld [vmem:[%s1 + $0x4] sm:$0xf]
  %v23 = vunpack.c.l.bf16 %v21
  %v24 = vunpack.c.l.bf16 %v22
  %v25 = vadd.f32 %v19, %v23
  %v26 = vadd.f32 %v20, %v24
  %vm27 = vcmask 261120
  %v28 = vsel %vm27, %v25, 0.0
  %29 = vadd.xlane.f32.xlu0 %v28
  %v30 = vpop.xlane.xlu0 %29
  %v31 = vsel %vm27, %v26, 0.0
  %32 = vadd.xlane.f32.xlu0 %v31
  %v33 = vpop.xlane.xlu0 %32
  %v34 = vrcp.pop 32.0
  %v35 = vmul.f32 %v30, %v34
  %v36 = vmul.f32 %v33, %v34
  %v37 = vsub.f32 %v25, %v35
  %v38 = vsub.f32 %v26, %v36
  %v39 = vmul.f32 %v37, %v37
  %v40 = vmul.f32 %v38, %v38
  %v41 = vsel %vm27, %v39, 0.0
  %42 = vadd.xlane.f32.xlu0 %v41
  %v43 = vpop.xlane.xlu0 %42
  %v44 = vsel %vm27, %v40, 0.0
  %45 = vadd.xlane.f32.xlu0 %v44
  %v46 = vpop.xlane.xlu0 %45
  %v47 = vmul.f32 %v43, %v34
  %v48 = vmul.f32 %v46, %v34
  %v49 = vadd.f32 %v47, 1e-12
  %v50 = vadd.f32 %v48, 1e-12
  %v51 = vrsqrt.pop %v49
  %v52 = vrsqrt.pop %v50
  %v53 = vmul.f32 %v37, %v51
  %v54 = vmul.f32 %v38, %v52
  %v55 = vld [vmem:[%s2] sm:$0x1]
  %v57 = vlaneseq
  %v58 = vshrl.u32 %v57, 7
  %v59 = vsub.s32 0, %v58
  %v60 = vrot.slane %v55, %v59
  %v62 = vmul.f32 %v53, %v60
  %v63 = vmul.f32 %v54, %v60
  %v64 = vld [vmem:[%s3] sm:$0x1]
  %v66 = vlaneseq
  %v67 = vshrl.u32 %v66, 7
  %v68 = vsub.s32 0, %v67
  %v69 = vrot.slane %v64, %v68
  %v71 = vadd.f32 %v62, %v69
  %v72 = vadd.f32 %v63, %v69
  %v73 = vpack.c.bf16 %v72, %v71
  %v75 = vunpack.c.l.b16 %v73
  %v76 = vunpack.c.h.b16 %v73
  %v77 = vpack.c.b16 %v75, %v75
  %v78 = vpack.c.b16 %v76, %v76
  %vm81 = vcmask 257024
  %82 = vst.msk [vmem:[%s4] sm:$0xf] %vm81, %v77
  %83 = vst.msk [vmem:[%s4 + $0x4] sm:$0xf] %vm81, %v78
  // Predicated region
  $region18: #{bert_forward.18} parent=0 // pred_check
    _
  $region19: #{bert_forward.18} parent=0 // pred_check_branch
    %85 = sbr.rel (0) target = $region21
  $region20: #{bert_forward.18} parent=0 // pred_region
    _
  $region21: #{bert_forward.18} parent=0 // pred_fallthru
    _
  // Predicated region
  $region22: #{bert_forward.18} parent=0 // pred_check
    _
  $region23: #{bert_forward.18} parent=0 // pred_check_branch
    %87 = sbr.rel (0) target = $region25
  $region24: #{bert_forward.18} parent=0 // pred_region
    _
  $region25: #{bert_forward.18} parent=0 // pred_fallthru
    _

// kernel: bert_forward.19
$region0: #{bert_forward.19}
  #allocation0 [shape = 'u32[]', space=smem, size = 0x4, offset = 0x4, fixed_abs, tag = 'smem constant byte address 0x4 - core index']
  #allocation1 [shape = 'u32[144,128]{1,0:T(1,128)}', space=vmem, size = 0x12000, scoped, tag = 'internal scratch']
  #allocation2 [shape = 'f32[16,32]{1,0:T(8,128)}', space=vmem, size = 0x2000, scoped, tag = 'scratch operand']
  %s0 = inlined_call_operand.vmem [shape: bf16[16,32], index: 0, kind: input, shape index: {}]
  %s1 = inlined_call_operand.vmem [shape: bf16[32,64], index: 1, kind: input, shape index: {}]
  %s2 = inlined_call_operand.vmem [shape: f32[1,64], index: 2, kind: input, shape index: {}]
  %s3 = inlined_call_operand.vmem [shape: bf16[64,32], index: 3, kind: input, shape index: {}]
  %s4 = inlined_call_operand.vmem [shape: f32[1,32], index: 4, kind: input, shape index: {}]
  %s5 = inlined_call_operand.vmem [shape: bf16[16,32], index: 5, kind: output, shape index: {}]
  %s6 = sld [smem:[#allocation0]]
  $region38: #{bert_forward.19} parent=0
    _
  %s8 = ssub.s32 1, %s6
  %s9 = scalar_select 0, %s8, %s6
  // Predicated region
  $region2: #{bert_forward.19} parent=0 // pred_check
    _
  $region3: #{bert_forward.19} parent=0 // pred_check_branch
    %11 = sbr.rel (0) target = $region5
  $region4: #{bert_forward.19} parent=0 // pred_region
    _
  $region5: #{bert_forward.19} parent=0 // pred_fallthru
    _
  // Predicated region
  $region6: #{bert_forward.19} parent=0 // pred_check
    _
  $region7: #{bert_forward.19} parent=0 // pred_check_branch
    %13 = sbr.rel (0) target = $region9
  $region8: #{bert_forward.19} parent=0 // pred_region
    _
  $region9: #{bert_forward.19} parent=0 // pred_fallthru
    _
  // Predicated region
  $region10: #{bert_forward.19} parent=0 // pred_check
    _
  $region11: #{bert_forward.19} parent=0 // pred_check_branch
    %15 = sbr.rel (0) target = $region13
  $region12: #{bert_forward.19} parent=0 // pred_region
    _
  $region13: #{bert_forward.19} parent=0 // pred_fallthru
    _
  // Predicated region
  $region14: #{bert_forward.19} parent=0 // pred_check
    _
  $region15: #{bert_forward.19} parent=0 // pred_check_branch
    %17 = sbr.rel (0) target = $region17
  $region16: #{bert_forward.19} parent=0 // pred_region
    _
  $region17: #{bert_forward.19} parent=0 // pred_fallthru
    _
  // Predicated region
  $region18: #{bert_forward.19} parent=0 // pred_check
    _
  $region19: #{bert_forward.19} parent=0 // pred_check_branch
    %19 = sbr.rel (0) target = $region21
  $region20: #{bert_forward.19} parent=0 // pred_region
    _
  $region21: #{bert_forward.19} parent=0 // pred_fallthru
    _
  %p21 = scmp.eq.s32.totalorder 0, 0
  // Predicated region
  $region22: #{bert_forward.19} parent=0 // pred_check
    %p22 = pneg %p21
  $region23: #{bert_forward.19} parent=0 // pred_check_branch
    %24 = sbr.rel (%p22) target = $region25
  $region24: #{bert_forward.19} parent=0 // pred_region
    %vm25 = vcmask 261120
    %26 = vst.msk [vmem:[#allocation2] sm:$0xff] %vm25, 0.0
    %27 = vst.msk [vmem:[#allocation2 + $0x8] sm:$0xff] %vm25, 0.0
  $region25: #{bert_forward.19} parent=0 // pred_fallthru
    _
  %v28 = vld [vmem:[%s0] sm:$0xf]
  %v29 = vld [vmem:[%s0 + $0x4] sm:$0xf]
  %v30 = vld [vmem:[%s1] sm:$0xf]
  %v31 = vld [vmem:[%s1 + $0x4] sm:$0xf]
  %v32 = vld [vmem:[%s1 + $0x8] sm:$0xf]
  %v33 = vld [vmem:[%s1 + $0xc] sm:$0xf]
  %v34 = vld [vmem:[%s2] sm:$0x1]
  %v36 = vlaneseq
  %v37 = vshrl.u32 %v36, 7
  %v38 = vsub.s32 0, %v37
  %v39 = vrot.slane %v34, %v38
  %v43 = vunpack.c.l.b16 %v28
  %v44 = vunpack.c.l.b16 %v29
  %v45 = vpack.c.b16 %v44, %v43
  %v50 = vunpack.c.l.b16 %v30
  %v51 = vunpack.c.l.b16 %v31
  %v52 = vunpack.c.l.b16 %v32
  %v53 = vunpack.c.l.b16 %v33
  %v54 = vpack.c.b16 %v51, %v50
  %v55 = vpack.c.b16 %v53, %v52
  %vm58 = vcmask 261120
  %v60 = vsel %vm58, %v45, 0
  %62 = vmatprep.subr.bf16.mxu0 0
  %63 = vmatpush1.bf16.msra.mxu0 %v54
  %64 = vmatprep.subr.bf16.mxu0 0
  %65 = vmatpush1.bf16.msra.mxu0 %v55
  %66 = vmatprep.subr.bf16.mxu0 0
  %67 = vmatpush1.bf16.msra.mxu0 0
  %68 = vmatprep.subr.bf16.mxu0 0
  %69 = vmatpush1.bf16.msra.mxu0 0
  %70 = vmatprep.subr.bf16.mxu0 0
  %71 = vmatpush1.bf16.msra.mxu0 0
  %72 = vmatprep.subr.bf16.mxu0 0
  %73 = vmatpush1.bf16.msra.mxu0 0
  %74 = vmatprep.subr.bf16.mxu0 0
  %75 = vmatpush1.bf16.msra.mxu0 0
  %76 = vmatprep.subr.bf16.mxu0 0
  %77 = vmatpush1.bf16.msra.mxu0 0
  %78 = vmatprep.subr.bf16.mxu0 0
  %79 = vmatpush1.bf16.msra.mxu0 0
  %80 = vmatprep.subr.bf16.mxu0 0
  %81 = vmatpush1.bf16.msra.mxu0 0
  %82 = vmatprep.subr.bf16.mxu0 0
  %83 = vmatpush1.bf16.msra.mxu0 0
  %84 = vmatprep.subr.bf16.mxu0 0
  %85 = vmatpush1.bf16.msra.mxu0 0
  %86 = vmatprep.subr.bf16.mxu0 0
  %87 = vmatpush1.bf16.msra.mxu0 0
  %88 = vmatprep.subr.bf16.mxu0 0
  %89 = vmatpush1.bf16.msra.mxu0 0
  %90 = vmatprep.subr.bf16.mxu0 0
  %91 = vmatpush1.bf16.msra.mxu0 0
  %92 = vmatprep.subr.bf16.mxu0 0
  %93 = vmatpush1.bf16.msra.mxu0 0
  %94 = vmatprep.mubr.bf16.mxu0 0
  %95 = vmatmul.mubr.bf16.gmra.mrb[0].mxu0 %v60
  %v96 = vpop.f32.mrb[0].mxu0
  %v97 = vadd.f32 %v39, %v96
  %v98 = vpop.f32.mrb[0].mxu0
  %v99 = vpop.f32.mrb[0].mxu0
  %v100 = vadd.f32 %v39, %v99
  %v101 = vpop.f32.mrb[0].mxu0
  %102 = vdwg.mxu0
  %v103 = vmul.f32 %v97, 0.5
  %v104 = vmul.f32 %v100, 0.5
  %v105 = vmul.f32 %v97, 0.70710677
  %v106 = vmul.f32 %v100, 0.70710677
  %v107 = verf.f32.pop %v105
  %v108 = verf.f32.pop %v106
  %v109 = vadd.f32 %v107, 1.0
  %v110 = vadd.f32 %v108, 1.0
  %v111 = vmul.f32 %v103, %v109
  %v112 = vmul.f32 %v104, %v110
  %v113 = vld [vmem:[#allocation2] sm:$0xff]
  %v114 = vld [vmem:[#allocation2 + $0x8] sm:$0xff]
  %v115 = vpack.c.bf16 %v112, %v111
  %v116 = vld [vmem:[%s3] sm:$0xf]
  %v117 = vld [vmem:[%s3 + $0x4] sm:$0xf]
  %v118 = vld [vmem:[%s3 + $0x8] sm:$0xf]
  %v119 = vld [vmem:[%s3 + $0xc] sm:$0xf]
  %v120 = vld [vmem:[%s3 + $0x10] sm:$0xf]
  %v121 = vld [vmem:[%s3 + $0x14] sm:$0xf]
  %v122 = vld [vmem:[%s3 + $0x18] sm:$0xf]
  %v123 = vld [vmem:[%s3 + $0x1c] sm:$0xf]
  %v132 = vunpack.c.l.b16 %v116
  %v133 = vunpack.c.l.b16 %v117
  %v134 = vunpack.c.l.b16 %v118
  %v135 = vunpack.c.l.b16 %v119
  %v136 = vunpack.c.l.b16 %v120
  %v137 = vunpack.c.l.b16 %v121
  %v138 = vunpack.c.l.b16 %v122
  %v139 = vunpack.c.l.b16 %v123
  %v140 = vpack.c.b16 %v133, %v132
  %v141 = vpack.c.b16 %v135, %v134
  %v142 = vpack.c.b16 %v137, %v136
  %v143 = vpack.c.b16 %v139, %v138
  %vm148 = vcmask 523264
  %v150 = vsel %vm148, %v115, 0
  %152 = vmatprep.subr.bf16.mxu0 0
  %153 = vmatpush1.bf16.msra.mxu0 %v140
  %154 = vmatprep.subr.bf16.mxu0 0
  %155 = vmatpush1.bf16.msra.mxu0 %v141
  %156 = vmatprep.subr.bf16.mxu0 0
  %157 = vmatpush1.bf16.msra.mxu0 %v142
  %158 = vmatprep.subr.bf16.mxu0 0
  %159 = vmatpush1.bf16.msra.mxu0 %v143
  %160 = vmatprep.subr.bf16.mxu0 0
  %161 = vmatpush1.bf16.msra.mxu0 0
  %162 = vmatprep.subr.bf16.mxu0 0
  %163 = vmatpush1.bf16.msra.mxu0 0
  %164 = vmatprep.subr.bf16.mxu0 0
  %165 = vmatpush1.bf16.msra.mxu0 0
  %166 = vmatprep.subr.bf16.mxu0 0
  %167 = vmatpush1.bf16.msra.mxu0 0
  %168 = vmatprep.subr.bf16.mxu0 0
  %169 = vmatpush1.bf16.msra.mxu0 0
  %170 = vmatprep.subr.bf16.mxu0 0
  %171 = vmatpush1.bf16.msra.mxu0 0
  %172 = vmatprep.subr.bf16.mxu0 0
  %173 = vmatpush1.bf16.msra.mxu0 0
  %174 = vmatprep.subr.bf16.mxu0 0
  %175 = vmatpush1.bf16.msra.mxu0 0
  %176 = vmatprep.subr.bf16.mxu0 0
  %177 = vmatpush1.bf16.msra.mxu0 0
  %178 = vmatprep.subr.bf16.mxu0 0
  %179 = vmatpush1.bf16.msra.mxu0 0
  %180 = vmatprep.subr.bf16.mxu0 0
  %181 = vmatpush1.bf16.msra.mxu0 0
  %182 = vmatprep.subr.bf16.mxu0 0
  %183 = vmatpush1.bf16.msra.mxu0 0
  %184 = vmatprep.mubr.bf16.mxu0 0
  %185 = vmatmul.mubr.bf16.gmra.mrb[0].mxu0 %v150
  %v186 = vpop.f32.mrb[0].mxu0
  %v187 = vadd.f32 0.0, %v186
  %v188 = vpop.f32.mrb[0].mxu0
  %v189 = vpop.f32.mrb[0].mxu0
  %v190 = vadd.f32 0.0, %v189
  %v191 = vpop.f32.mrb[0].mxu0
  %192 = vdwg.mxu0
  %v193 = vadd.f32 %v113, %v187
  %v194 = vadd.f32 %v114, %v190
  %195 = vst.msk [vmem:[#allocation2] sm:$0xff] %vm58, %v193
  %196 = vst.msk [vmem:[#allocation2 + $0x8] sm:$0xff] %vm58, %v194
  // Predicated region
  $region26: #{bert_forward.19} parent=0 // pred_check
    %p197 = pneg %p21
  $region27: #{bert_forward.19} parent=0 // pred_check_branch
    %199 = sbr.rel (%p197) target = $region29
  $region28: #{bert_forward.19} parent=0 // pred_region
    %v200 = vld [vmem:[#allocation2] sm:$0xff]
    %v201 = vld [vmem:[#allocation2 + $0x8] sm:$0xff]
    %v202 = vld [vmem:[%s4] sm:$0x1]
    %v204 = vlaneseq
    %v205 = vshrl.u32 %v204, 7
    %v206 = vsub.s32 0, %v205
    %v207 = vrot.slane %v202, %v206
    %v209 = vadd.f32 %v200, %v207
    %v210 = vadd.f32 %v201, %v207
    %v211 = vpack.c.bf16 %v210, %v209
    %v213 = vunpack.c.l.b16 %v211
    %v214 = vunpack.c.h.b16 %v211
    %v215 = vpack.c.b16 %v213, %v213
    %v216 = vpack.c.b16 %v214, %v214
    %vm219 = vcmask 257024
    %220 = vst.msk [vmem:[%s5] sm:$0xf] %vm219, %v215
    %221 = vst.msk [vmem:[%s5 + $0x4] sm:$0xf] %vm219, %v216
  $region29: #{bert_forward.19} parent=0 // pred_fallthru
    _
  // Predicated region
  $region30: #{bert_forward.19} parent=0 // pred_check
    _
  $region31: #{bert_forward.19} parent=0 // pred_check_branch
    %223 = sbr.rel (0) target = $region33
  $region32: #{bert_forward.19} parent=0 // pred_region
    _
  $region33: #{bert_forward.19} parent=0 // pred_fallthru
    _
  // Predicated region
  $region34: #{bert_forward.19} parent=0 // pred_check
    _
  $region35: #{bert_forward.19} parent=0 // pred_check_branch
    %225 = sbr.rel (0) target = $region37
  $region36: #{bert_forward.19} parent=0 // pred_region
    _
  $region37: #{bert_forward.19} parent=0 // pred_fallthru
    _

// kernel: bert_forward.27
$region0: #{bert_forward.27}
  #allocation0 [shape = 'u32[]', space=smem, size = 0x4, offset = 0x4, fixed_abs, tag = 'smem constant byte address 0x4 - core index']
  #allocation1 [shape = 'u32[144,128]{1,0:T(1,128)}', space=vmem, size = 0x12000, scoped, tag = 'internal scratch']
  #allocation2 [shape = 'f32[2,128]{1,0:T(2,128)}', space=vmem, size = 0x400, scoped, tag = 'scratch operand']
  %s0 = inlined_call_operand.vmem [shape: bf16[2,32], index: 0, kind: input, shape index: {}]
  %s1 = inlined_call_operand.vmem [shape: bf16[32,128], index: 1, kind: input, shape index: {}]
  %s2 = inlined_call_operand.vmem [shape: f32[1,128], index: 2, kind: input, shape index: {}]
  %s3 = inlined_call_operand.hbm [shape: f32[2,128], index: 3, kind: output, shape index: {}]
  %s4 = sld [smem:[#allocation0]]
  $region30: #{bert_forward.27} parent=0
    _
  %s6 = ssub.s32 1, %s4
  %s7 = scalar_select 0, %s6, %s4
  $region1: #{bert_forward.27} parent=0
    #allocation3 [shape = 'u8[1024]{0}', space=vmem, size = 0x400, scoped, tag = 'output window, operand 0, single buffered']
    #allocation4 [shape = 's32[1]{0}', space=sflag, size = 0x4, scoped, tag = 'scoped memory for bert_forward.27']
    %8 = vsyncpa [#allocation4], 0
    // Predicated region
    $region2: #{bert_forward.27} parent=1 // pred_check
      _
    $region3: #{bert_forward.27} parent=1 // pred_check_branch
      %10 = sbr.rel (0) target = $region5
    $region4: #{bert_forward.27} parent=1 // pred_region
      _
    $region5: #{bert_forward.27} parent=1 // pred_fallthru
      _
    // Predicated region
    $region6: #{bert_forward.27} parent=1 // pred_check
      _
    $region7: #{bert_forward.27} parent=1 // pred_check_branch
      %12 = sbr.rel (0) target = $region9
    $region8: #{bert_forward.27} parent=1 // pred_region
      _
    $region9: #{bert_forward.27} parent=1 // pred_fallthru
      _
    // Predicated region
    $region10: #{bert_forward.27} parent=1 // pred_check
      _
    $region11: #{bert_forward.27} parent=1 // pred_check_branch
      %14 = sbr.rel (0) target = $region13
    $region12: #{bert_forward.27} parent=1 // pred_region
      _
    $region13: #{bert_forward.27} parent=1 // pred_fallthru
      _
    %p16 = scmp.eq.s32.totalorder 0, 0
    // Predicated region
    $region14: #{bert_forward.27} parent=1 // pred_check
      %p17 = pneg %p16
    $region15: #{bert_forward.27} parent=1 // pred_check_branch
      %19 = sbr.rel (%p17) target = $region17
    $region16: #{bert_forward.27} parent=1 // pred_region
      %20 = vst [vmem:[#allocation2] sm:$0x3] 0.0
    $region17: #{bert_forward.27} parent=1 // pred_fallthru
      _
    %v21 = vld [vmem:[#allocation2] sm:$0x3]
    %v22 = vld [vmem:[%s0] sm:$0x1]
    %v23 = vld [vmem:[%s1] sm:$0xf]
    %v24 = vld [vmem:[%s1 + $0x4] sm:$0xf]
    %v25 = vld [vmem:[%s1 + $0x8] sm:$0xf]
    %v26 = vld [vmem:[%s1 + $0xc] sm:$0xf]
    %v31 = vunpack.c.l.b16 %v23
    %v32 = vunpack.c.l.b16 %v24
    %v33 = vunpack.c.l.b16 %v25
    %v34 = vunpack.c.l.b16 %v26
    %v35 = vpack.c.b16 %v32, %v31
    %v36 = vpack.c.b16 %v34, %v33
    %vm39 = vcmask 261120
    %v41 = vsel %vm39, %v22, 0
    %43 = vmatprep.subr.bf16.mxu0 0
    %44 = vmatpush1.bf16.msra.mxu0 %v35
    %45 = vmatprep.subr.bf16.mxu0 0
    %46 = vmatpush1.bf16.msra.mxu0 %v36
    %47 = vmatprep.subr.bf16.mxu0 0
    %48 = vmatpush1.bf16.msra.mxu0 0
    %49 = vmatprep.subr.bf16.mxu0 0
    %50 = vmatpush1.bf16.msra.mxu0 0
    %51 = vmatprep.subr.bf16.mxu0 0
    %52 = vmatpush1.bf16.msra.mxu0 0
    %53 = vmatprep.subr.bf16.mxu0 0
    %54 = vmatpush1.bf16.msra.mxu0 0
    %55 = vmatprep.subr.bf16.mxu0 0
    %56 = vmatpush1.bf16.msra.mxu0 0
    %57 = vmatprep.subr.bf16.mxu0 0
    %58 = vmatpush1.bf16.msra.mxu0 0
    %59 = vmatprep.subr.bf16.mxu0 0
    %60 = vmatpush1.bf16.msra.mxu0 0
    %61 = vmatprep.subr.bf16.mxu0 0
    %62 = vmatpush1.bf16.msra.mxu0 0
    %63 = vmatprep.subr.bf16.mxu0 0
    %64 = vmatpush1.bf16.msra.mxu0 0
    %65 = vmatprep.subr.bf16.mxu0 0
    %66 = vmatpush1.bf16.msra.mxu0 0
    %67 = vmatprep.subr.bf16.mxu0 0
    %68 = vmatpush1.bf16.msra.mxu0 0
    %69 = vmatprep.subr.bf16.mxu0 0
    %70 = vmatpush1.bf16.msra.mxu0 0
    %71 = vmatprep.subr.bf16.mxu0 0
    %72 = vmatpush1.bf16.msra.mxu0 0
    %73 = vmatprep.subr.bf16.mxu0 0
    %74 = vmatpush1.bf16.msra.mxu0 0
    %75 = vmatprep.mubr.bf16.mxu0 0
    %76 = vmatmul.mubr.bf16.gmra.mrb[0].mxu0 %v41
    %v77 = vpop.f32.mrb[0].mxu0
    %v78 = vadd.f32 0.0, %v77
    %v79 = vpop.f32.mrb[0].mxu0
    %v80 = vpop.f32.mrb[0].mxu0
    %v81 = vpop.f32.mrb[0].mxu0
    %82 = vdwg.mxu0
    %v83 = vadd.f32 %v21, %v78
    %84 = vst [vmem:[#allocation2] sm:$0x3] %v83
    // Predicated region
    $region18: #{bert_forward.27} parent=1 // pred_check
      %p85 = pneg %p16
    $region19: #{bert_forward.27} parent=1 // pred_check_branch
      %87 = sbr.rel (%p85) target = $region21
    $region20: #{bert_forward.27} parent=1 // pred_region
      %v88 = vld [vmem:[#allocation2] sm:$0x3]
      %v89 = vld [vmem:[%s2] sm:$0x1]
      %v91 = vlaneseq
      %v92 = vshrl.u32 %v91, 7
      %v93 = vsub.s32 0, %v92
      %v94 = vrot.slane %v89, %v93
      %v96 = vadd.f32 %v88, %v94
      %97 = vst [vmem:[#allocation3] sm:$0x3] %v96
    $region21: #{bert_forward.27} parent=1 // pred_fallthru
      _
    // Predicated region
    $region22: #{bert_forward.27} parent=1 // pred_check
      _
    $region23: #{bert_forward.27} parent=1 // pred_check_branch
      %99 = sbr.rel (0) target = $region25
    $region24: #{bert_forward.27} parent=1 // pred_region
      %s101 = ssub.s32 32, 32
      %102 = vsyncadd [#allocation4], %s101
      %s104 = sshll.u32 [#allocation3], 4
      %s105 = int_to_ptr.vmem [resolvable:$true] %s104
      %107 = dma.vmem_to_hbm [thread:$0]  %s105, 32, %s3, [#allocation4]
    $region25: #{bert_forward.27} parent=1 // pred_fallthru
      _
    // Predicated region
    $region26: #{bert_forward.27} parent=1 // pred_check
      _
    $region27: #{bert_forward.27} parent=1 // pred_check_branch
      %109 = sbr.rel (0) target = $region29
    $region28: #{bert_forward.27} parent=1 // pred_region
      %110 = dma.done [#allocation4], 32
    $region29: #{bert_forward.27} parent=1 // pred_fallthru
      _
    %111 = vsyncpa [#allocation4], 1

</llo_original>
